<compile_context>
chip_gen: v7x
topology: tpu7x:2x2x1
jax: 0.10.0
libtpu: 0.0.40
codegen_flags: <defaults>
</compile_context>

<pallas_src>
import functools

import jax
import jax.numpy as jnp
from jax import lax
from jax.experimental import pallas as pl
from jax.experimental.pallas import tpu as pltpu


# ----------------------------- Pallas kernels ------------------------------ #

def _attn_kernel(x_tok_ref, x_cm_ref, wqk_ref, bqk_ref, wv_ref, bv_ref, o_ref,
                 *, num_heads, embed_dim):
    """Fused qkv projection + multi-head attention for one batch element.

    x_tok_ref: (1, S, C) token-major input   (x.view(b,c,S).transpose(1,2))
    x_cm_ref:  (1, C, S) channel-major input (native NCHW layout, free reshape)
    wqk_ref:   (C, 2C)   q|k weight, pre-transposed so qk = x_tok @ W
    bqk_ref:   (1, 2C)   q|k bias
    wv_ref:    (C, C)    v weight (NOT transposed; used as v_t = W @ x_cm)
    bv_ref:    (C, 1)    v bias (column vector, broadcast along lanes)
    o_ref:     (1, C, S) attention output, channel-major == x_att.transpose(1,2)
    """
    x_tok = x_tok_ref[0]                                   # (S, C)
    x_cm = x_cm_ref[0]                                     # (C, S)

    qk = jnp.dot(x_tok, wqk_ref[...],
                 preferred_element_type=jnp.float32) + bqk_ref[...]   # (S, 2C)
    v_t = jnp.dot(wv_ref[...], x_cm,
                  preferred_element_type=jnp.float32) + bv_ref[...]   # (C, S)

    head_dim = embed_dim // num_heads
    # PyTorch module scales by embed_dim ** 0.5 (NOT head_dim ** 0.5) -- faithful.
    scale = 1.0 / (embed_dim ** 0.5)

    for h in range(num_heads):                             # static, small loop
        qh = qk[:, h * head_dim:(h + 1) * head_dim] * scale          # (S, hd)
        kh = qk[:, embed_dim + h * head_dim:
                embed_dim + (h + 1) * head_dim]                      # (S, hd)
        vh_t = v_t[h * head_dim:(h + 1) * head_dim, :]               # (hd, S)

        # scores s[q, k] = sum_d qh[q, d] * kh[k, d]   (contract-last-dims)
        s = lax.dot_general(qh, kh, (((1,), (1,)), ((), ())),
                            preferred_element_type=jnp.float32)      # (S, S)
        s = s - jnp.max(s, axis=-1, keepdims=True)
        p = jnp.exp(s)
        p = p * pl.reciprocal(jnp.sum(p, axis=-1, keepdims=True), approx=True)
        # TODO(synk): attn_dropout(p=0.1) is identity in eval mode; training-mode
        # dropout (in-kernel PRNG mask) intentionally not applied here.

        # o_h_t[d, q] = sum_k vh_t[d, k] * p[q, k] == (p @ vh).T  -> head-major rows,
        # written directly into the channel-major output slice (no concat).
        o_h_t = lax.dot_general(vh_t, p, (((1,), (1,)), ((), ())),
                                preferred_element_type=jnp.float32)  # (hd, S)
        o_ref[0, h * head_dim:(h + 1) * head_dim, :] = o_h_t.astype(o_ref.dtype)


def _proj_kernel(y_ref, w_ref, b_ref, o_ref):
    """Lane-dense grouped output projection: o = y @ W_blockdiag + b_tiled."""
    o_ref[...] = (jnp.dot(y_ref[...], w_ref[...],
                          preferred_element_type=jnp.float32)
                  + b_ref[...]).astype(o_ref.dtype)


# ------------------------------ wrapper (glue) ------------------------------ #

def sa_forward(x, params, num_heads):
    """x: (b, c, h, w) float32 (NCHW, matching the PyTorch module)."""
    b, c, h, w = x.shape
    s = h * w
    embed_dim = c

    wqkv = params["wqkv"]                   # (3C, C)
    bqkv = params["bqkv"]                   # (3C,)
    wqk_t = wqkv[:2 * c, :].T               # (C, 2C)
    bqk = bqkv[:2 * c][None, :]             # (1, 2C)
    wv = wqkv[2 * c:, :]                    # (C, C)  (not transposed: v_t = wv @ x_cm)
    bv = bqkv[2 * c:][:, None]              # (C, 1)

    x_cm = x.reshape(b, c, s)                           # (b, C, S)  free reshape
    x_tok = jnp.transpose(x_cm, (0, 2, 1))              # (b, S, C)  tiny XLA transpose

    attn_t = pl.pallas_call(
        functools.partial(_attn_kernel, num_heads=num_heads, embed_dim=embed_dim),
        out_shape=jax.ShapeDtypeStruct((b, c, s), jnp.float32),
        grid=(b,),
        in_specs=[
            pl.BlockSpec((1, s, c), lambda i: (i, 0, 0)),
            pl.BlockSpec((1, c, s), lambda i: (i, 0, 0)),
            pl.BlockSpec((c, 2 * c), lambda i: (0, 0)),
            pl.BlockSpec((1, 2 * c), lambda i: (0, 0)),
            pl.BlockSpec((c, c), lambda i: (0, 0)),
            pl.BlockSpec((c, 1), lambda i: (0, 0)),
        ],
        out_specs=pl.BlockSpec((1, c, s), lambda i: (i, 0, 0)),
        compiler_params=pltpu.CompilerParams(dimension_semantics=("parallel",)),
    )(x_tok, x_cm, wqk_t, bqk, wv, bv)                  # (b, C, S) == x_att.transpose(1,2)

    # Faithful reproduction of the module's reinterpretation
    # x_att.transpose(1,2).contiguous().view(b*h*w, C): attn_t is already the
    # transposed tensor, so the "view" is a FREE row-major reshape (no data movement).
    # The projection runs in a lane-dense grouped view: (b*S, C) ~ (b*S/g, g*C),
    # with the block-diagonal weight kron(I_g, Wproj^T); flat order is preserved.
    wproj_t = params["wproj"].T                         # (C, C)
    if c <= 128 and 128 % c == 0 and (b * s) % (128 // c) == 0:
        g = 128 // c
    else:
        g = 1
    if g > 1:
        w_big = jnp.kron(jnp.eye(g, dtype=wproj_t.dtype), wproj_t)   # (g*C, g*C)
        b_big = jnp.tile(params["bproj"], g)[None, :]                # (1, g*C)
    else:
        w_big = wproj_t
        b_big = params["bproj"][None, :]
    rows = (b * s) // g
    cols = g * c
    y2 = attn_t.reshape(rows, cols)                     # free bitcast (the "scramble")

    proj_out = pl.pallas_call(
        _proj_kernel,
        out_shape=jax.ShapeDtypeStruct((rows, cols), jnp.float32),
        in_specs=[
            pl.BlockSpec((rows, cols), lambda: (0, 0)),
            pl.BlockSpec((cols, cols), lambda: (0, 0)),
            pl.BlockSpec((1, cols), lambda: (0, 0)),
        ],
        out_specs=pl.BlockSpec((rows, cols), lambda: (0, 0)),
    )(y2, w_big, b_big)                                 # (b*S/g, g*C)

    # Module's x_att.view(b, C, h, w): flat order already matches -> free reshape.
    return proj_out.reshape(b, c, h, w)


# ----------------------------- pure-JAX reference --------------------------- #

def sa_reference(x, params, num_heads):
    b, c, h, w = x.shape
    s = h * w
    x_flat = jnp.transpose(x.reshape(b, c, s), (0, 2, 1)).reshape(b * s, c)
    qkv = x_flat @ params["wqkv"].T + params["bqkv"]
    q, k, v = jnp.split(qkv, 3, axis=-1)
    hd = c // num_heads
    q = jnp.transpose(q.reshape(b, s, num_heads, hd), (0, 2, 1, 3))
    k = jnp.transpose(k.reshape(b, s, num_heads, hd), (0, 2, 1, 3))
    v = jnp.transpose(v.reshape(b, s, num_heads, hd), (0, 2, 1, 3))
    aw = jnp.einsum("bnqd,bnkd->bnqk", q, k) / (c ** 0.5)
    aw = jax.nn.softmax(aw, axis=-1)
    x_att = jnp.einsum("bnqk,bnkd->bnqd", aw, v)
    x_att = jnp.transpose(x_att, (0, 2, 1, 3)).reshape(b, s, c)
    x_att = jnp.transpose(x_att, (0, 2, 1)).reshape(b * s, c)
    x_att = x_att @ params["wproj"].T + params["bproj"]
    return x_att.reshape(b, c, h, w)


# ----------------------------------- main ----------------------------------- #

if __name__ == "__main__":
    B, C, H, W = 2, 8, 16, 16
    NUM_HEADS = 2

    key = jax.random.PRNGKey(0)
    kx, k1, k2, k3, k4 = jax.random.split(key, 5)

    x = jax.random.normal(kx, (B, C, H, W), dtype=jnp.float32)

    # nn.Linear(C, 3C) and nn.Linear(C, C): weights are (out, in), biases (out,)
    params = {
        "wqkv": jax.random.normal(k1, (3 * C, C), dtype=jnp.float32) * 0.1,
        "bqkv": jax.random.normal(k2, (3 * C,), dtype=jnp.float32) * 0.1,
        "wproj": jax.random.normal(k3, (C, C), dtype=jnp.float32) * 0.1,
        "bproj": jax.random.normal(k4, (C,), dtype=jnp.float32) * 0.1,
    }

    out = sa_forward(x, params, NUM_HEADS)
    out = jax.block_until_ready(out)

    ref = jax.block_until_ready(sa_reference(x, params, NUM_HEADS))
    assert out.shape == (B, C, H, W)
    # Tolerance 2e-3 accommodates pl.reciprocal(approx=True) in the softmax denominator.
    assert jnp.allclose(out, ref, atol=2e-3, rtol=2e-3), "mismatch vs pure-JAX reference"

    print("KERNEL_OK")
</pallas_src>

<mosaic_0001>
module attributes {stable_mosaic.version = 11 : i64} {
  func.func @_attn_kernel(%arg0: i32, %arg1: memref<1x256x8xf32, #tpu.memory_space<vmem>>, %arg2: memref<1x8x256xf32, #tpu.memory_space<vmem>>, %arg3: memref<8x16xf32, #tpu.memory_space<vmem>>, %arg4: memref<1x16xf32, #tpu.memory_space<vmem>>, %arg5: memref<8x8xf32, #tpu.memory_space<vmem>>, %arg6: memref<8x1xf32, #tpu.memory_space<vmem>>, %arg7: memref<1x8x256xf32, #tpu.memory_space<vmem>>) attributes {dimension_semantics = [#tpu.dimension_semantics<parallel>], iteration_bounds = array<i64: 2>, scalar_prefetch = 0 : i64, scratch_operands = 0 : i64, tpu.core_type = #tpu.core_type<tc>, window_params = [{transform_indices = @transform_0, window_bounds = array<i64: 1, 256, 8>}, {transform_indices = @transform_1, window_bounds = array<i64: 1, 8, 256>}, {pipeline_mode = #tpu.pipeline_mode<synchronous>, transform_indices = @transform_2, window_bounds = array<i64: 8, 16>}, {pipeline_mode = #tpu.pipeline_mode<synchronous>, transform_indices = @transform_3, window_bounds = array<i64: 1, 16>}, {pipeline_mode = #tpu.pipeline_mode<synchronous>, transform_indices = @transform_4, window_bounds = array<i64: 8, 8>}, {pipeline_mode = #tpu.pipeline_mode<synchronous>, transform_indices = @transform_5, window_bounds = array<i64: 8, 1>}, {transform_indices = @transform_6, window_bounds = array<i64: 1, 8, 256>}]} {
    %c0 = arith.constant 0 : index
    %c0_0 = arith.constant 0 : index
    %c0_1 = arith.constant 0 : index
    %0 = vector.load %arg1[%c0, %c0_0, %c0_1] : memref<1x256x8xf32, #tpu.memory_space<vmem>>, vector<1x256x8xf32>
    %1 = vector.shape_cast %0 : vector<1x256x8xf32> to vector<256x8xf32>
    %c0_2 = arith.constant 0 : index
    %c0_3 = arith.constant 0 : index
    %c0_4 = arith.constant 0 : index
    %2 = vector.load %arg2[%c0_2, %c0_3, %c0_4] : memref<1x8x256xf32, #tpu.memory_space<vmem>>, vector<1x8x256xf32>
    %3 = vector.shape_cast %2 : vector<1x8x256xf32> to vector<8x256xf32>
    %c0_5 = arith.constant 0 : index
    %c0_6 = arith.constant 0 : index
    %4 = vector.load %arg3[%c0_5, %c0_6] : memref<8x16xf32, #tpu.memory_space<vmem>>, vector<8x16xf32>
    %cst = arith.constant dense<0.000000e+00> : vector<256x16xf32>
    %5 = tpu.matmul %1, %4, %cst {dimension_numbers = #tpu.dot_dimension_numbers<[1], [0], [0], [1], [0, 0, 1, 1], [], []>} : vector<256x8xf32>, vector<8x16xf32>, vector<256x16xf32> -> vector<256x16xf32>
    %c0_7 = arith.constant 0 : index
    %c0_8 = arith.constant 0 : index
    %6 = vector.load %arg4[%c0_7, %c0_8] : memref<1x16xf32, #tpu.memory_space<vmem>>, vector<1x16xf32>
    %7 = vector.broadcast %6 : vector<1x16xf32> to vector<256x16xf32>
    %8 = arith.addf %5, %7 : vector<256x16xf32>
    %c0_9 = arith.constant 0 : index
    %c0_10 = arith.constant 0 : index
    %9 = vector.load %arg5[%c0_9, %c0_10] : memref<8x8xf32, #tpu.memory_space<vmem>>, vector<8x8xf32>
    %cst_11 = arith.constant dense<0.000000e+00> : vector<8x256xf32>
    %10 = tpu.matmul %9, %3, %cst_11 {dimension_numbers = #tpu.dot_dimension_numbers<[1], [0], [0], [1], [0, 0, 1, 1], [], []>} : vector<8x8xf32>, vector<8x256xf32>, vector<8x256xf32> -> vector<8x256xf32>
    %c0_12 = arith.constant 0 : index
    %c0_13 = arith.constant 0 : index
    %11 = vector.load %arg6[%c0_12, %c0_13] : memref<8x1xf32, #tpu.memory_space<vmem>>, vector<8x1xf32>
    %12 = vector.broadcast %11 : vector<8x1xf32> to vector<8x256xf32>
    %13 = arith.addf %10, %12 : vector<8x256xf32>
    %14 = vector.extract_strided_slice %8 {offsets = [0, 0], sizes = [256, 4], strides = [1, 1]} : vector<256x16xf32> to vector<256x4xf32>
    %cst_14 = arith.constant 0.353553385 : f32
    %15 = vector.broadcast %cst_14 : f32 to vector<256x4xf32>
    %16 = arith.mulf %14, %15 : vector<256x4xf32>
    %17 = vector.extract_strided_slice %8 {offsets = [0, 8], sizes = [256, 4], strides = [1, 1]} : vector<256x16xf32> to vector<256x4xf32>
    %18 = vector.extract_strided_slice %13 {offsets = [0, 0], sizes = [4, 256], strides = [1, 1]} : vector<8x256xf32> to vector<4x256xf32>
    %cst_15 = arith.constant dense<0.000000e+00> : vector<256x256xf32>
    %19 = tpu.matmul %16, %17, %cst_15 {dimension_numbers = #tpu.dot_dimension_numbers<[1], [1], [0], [0], [0, 0, 1, 0], [], []>} : vector<256x4xf32>, vector<256x4xf32>, vector<256x256xf32> -> vector<256x256xf32>
    %cst_16 = arith.constant dense<0xFF800000> : vector<256xf32>
    %20 = vector.multi_reduction <maximumf>, %19, %cst_16 [1] : vector<256x256xf32> to vector<256xf32>
    %21 = vector.shape_cast %20 : vector<256xf32> to vector<256x1xf32>
    %22 = vector.broadcast %21 : vector<256x1xf32> to vector<256x256xf32>
    %23 = arith.subf %19, %22 : vector<256x256xf32>
    %24 = math.exp %23 : vector<256x256xf32>
    %cst_17 = arith.constant dense<0.000000e+00> : vector<256xf32>
    %25 = vector.multi_reduction <add>, %24, %cst_17 [1] : vector<256x256xf32> to vector<256xf32>
    %26 = vector.shape_cast %25 : vector<256xf32> to vector<256x1xf32>
    %27 = tpu.reciprocal %26 {approx = true} : vector<256x1xf32> -> vector<256x1xf32>
    %28 = vector.broadcast %27 : vector<256x1xf32> to vector<256x256xf32>
    %29 = arith.mulf %24, %28 : vector<256x256xf32>
    %cst_18 = arith.constant dense<0.000000e+00> : vector<4x256xf32>
    %30 = tpu.matmul %18, %29, %cst_18 {dimension_numbers = #tpu.dot_dimension_numbers<[1], [1], [0], [0], [0, 0, 1, 0], [], []>} : vector<4x256xf32>, vector<256x256xf32>, vector<4x256xf32> -> vector<4x256xf32>
    %c0_19 = arith.constant 0 : index
    %c0_20 = arith.constant 0 : index
    %c0_21 = arith.constant 0 : index
    %31 = vector.load %arg7[%c0_19, %c0_20, %c0_21] : memref<1x8x256xf32, #tpu.memory_space<vmem>>, vector<1x4x256xf32>
    %32 = vector.shape_cast %31 : vector<1x4x256xf32> to vector<4x256xf32>
    %33 = vector.shape_cast %30 : vector<4x256xf32> to vector<1x4x256xf32>
    tpu.vector_store %arg7[%c0_19, %c0_20, %c0_21], %33 {strides = array<i32>} : memref<1x8x256xf32, #tpu.memory_space<vmem>>, vector<1x4x256xf32>,
    %34 = vector.extract_strided_slice %8 {offsets = [0, 4], sizes = [256, 4], strides = [1, 1]} : vector<256x16xf32> to vector<256x4xf32>
    %cst_22 = arith.constant 0.353553385 : f32
    %35 = vector.broadcast %cst_22 : f32 to vector<256x4xf32>
    %36 = arith.mulf %34, %35 : vector<256x4xf32>
    %37 = vector.extract_strided_slice %8 {offsets = [0, 12], sizes = [256, 4], strides = [1, 1]} : vector<256x16xf32> to vector<256x4xf32>
    %38 = vector.extract_strided_slice %13 {offsets = [4, 0], sizes = [4, 256], strides = [1, 1]} : vector<8x256xf32> to vector<4x256xf32>
    %cst_23 = arith.constant dense<0.000000e+00> : vector<256x256xf32>
    %39 = tpu.matmul %36, %37, %cst_23 {dimension_numbers = #tpu.dot_dimension_numbers<[1], [1], [0], [0], [0, 0, 1, 0], [], []>} : vector<256x4xf32>, vector<256x4xf32>, vector<256x256xf32> -> vector<256x256xf32>
    %cst_24 = arith.constant dense<0xFF800000> : vector<256xf32>
    %40 = vector.multi_reduction <maximumf>, %39, %cst_24 [1] : vector<256x256xf32> to vector<256xf32>
    %41 = vector.shape_cast %40 : vector<256xf32> to vector<256x1xf32>
    %42 = vector.broadcast %41 : vector<256x1xf32> to vector<256x256xf32>
    %43 = arith.subf %39, %42 : vector<256x256xf32>
    %44 = math.exp %43 : vector<256x256xf32>
    %cst_25 = arith.constant dense<0.000000e+00> : vector<256xf32>
    %45 = vector.multi_reduction <add>, %44, %cst_25 [1] : vector<256x256xf32> to vector<256xf32>
    %46 = vector.shape_cast %45 : vector<256xf32> to vector<256x1xf32>
    %47 = tpu.reciprocal %46 {approx = true} : vector<256x1xf32> -> vector<256x1xf32>
    %48 = vector.broadcast %47 : vector<256x1xf32> to vector<256x256xf32>
    %49 = arith.mulf %44, %48 : vector<256x256xf32>
    %cst_26 = arith.constant dense<0.000000e+00> : vector<4x256xf32>
    %50 = tpu.matmul %38, %49, %cst_26 {dimension_numbers = #tpu.dot_dimension_numbers<[1], [1], [0], [0], [0, 0, 1, 0], [], []>} : vector<4x256xf32>, vector<256x256xf32>, vector<4x256xf32> -> vector<4x256xf32>
    %c0_27 = arith.constant 0 : index
    %c4 = arith.constant 4 : index
    %c0_28 = arith.constant 0 : index
    %51 = vector.load %arg7[%c0_27, %c4, %c0_28] : memref<1x8x256xf32, #tpu.memory_space<vmem>>, vector<1x4x256xf32>
    %52 = vector.shape_cast %51 : vector<1x4x256xf32> to vector<4x256xf32>
    %53 = vector.shape_cast %50 : vector<4x256xf32> to vector<1x4x256xf32>
    tpu.vector_store %arg7[%c0_27, %c4, %c0_28], %53 {strides = array<i32>} : memref<1x8x256xf32, #tpu.memory_space<vmem>>, vector<1x4x256xf32>,
    return
  }
  func.func @transform_0(%arg0: i32) -> (i32, i32, i32) {
    %c0_i32 = arith.constant 0 : i32
    %c0_i32_0 = arith.constant 0 : i32
    %c0_i32_1 = arith.constant 0 : i32
    return %arg0, %c0_i32, %c0_i32_0 : i32, i32, i32
  }
  func.func @transform_1(%arg0: i32) -> (i32, i32, i32) {
    %c0_i32 = arith.constant 0 : i32
    %c0_i32_0 = arith.constant 0 : i32
    %c0_i32_1 = arith.constant 0 : i32
    return %arg0, %c0_i32, %c0_i32_0 : i32, i32, i32
  }
  func.func @transform_2(%arg0: i32) -> (i32, i32) {
    %c0_i32 = arith.constant 0 : i32
    %c0_i32_0 = arith.constant 0 : i32
    %c0_i32_1 = arith.constant 0 : i32
    return %c0_i32, %c0_i32_0 : i32, i32
  }
  func.func @transform_3(%arg0: i32) -> (i32, i32) {
    %c0_i32 = arith.constant 0 : i32
    %c0_i32_0 = arith.constant 0 : i32
    %c0_i32_1 = arith.constant 0 : i32
    return %c0_i32, %c0_i32_0 : i32, i32
  }
  func.func @transform_4(%arg0: i32) -> (i32, i32) {
    %c0_i32 = arith.constant 0 : i32
    %c0_i32_0 = arith.constant 0 : i32
    %c0_i32_1 = arith.constant 0 : i32
    return %c0_i32, %c0_i32_0 : i32, i32
  }
  func.func @transform_5(%arg0: i32) -> (i32, i32) {
    %c0_i32 = arith.constant 0 : i32
    %c0_i32_0 = arith.constant 0 : i32
    %c0_i32_1 = arith.constant 0 : i32
    return %c0_i32, %c0_i32_0 : i32, i32
  }
  func.func @transform_6(%arg0: i32) -> (i32, i32, i32) {
    %c0_i32 = arith.constant 0 : i32
    %c0_i32_0 = arith.constant 0 : i32
    %c0_i32_1 = arith.constant 0 : i32
    return %arg0, %c0_i32, %c0_i32_0 : i32, i32, i32
  }
}

</mosaic_0001>

<llo_original>
// kernel: tpu_custom_call.1
$region0: #{tpu_custom_call.1}
  #allocation0 [shape = 'u32[]', space=smem, size = 0x4, offset = 0x4, fixed_abs, tag = 'smem constant byte address 0x4 - core index']
  #allocation1 [shape = 'u32[144,128]{1,0:T(1,128)}', space=vmem, size = 0x12000, scoped, tag = 'internal scratch']
  %s0 = inlined_call_operand.vmem [shape: f32[2,256,8], index: 0, kind: input, shape index: {}]
  %s1 = inlined_call_operand.vmem [shape: f32[2,8,256], index: 1, kind: input, shape index: {}]
  %s2 = inlined_call_operand.vmem [shape: f32[8,16], index: 2, kind: input, shape index: {}]
  %s3 = inlined_call_operand.vmem [shape: f32[1,16], index: 3, kind: input, shape index: {}]
  %s4 = inlined_call_operand.vmem [shape: f32[8,8], index: 4, kind: input, shape index: {}]
  %s5 = inlined_call_operand.vmem [shape: f32[8,1], index: 5, kind: input, shape index: {}]
  %s6 = inlined_call_operand.hbm [shape: f32[2,8,256], index: 6, kind: output, shape index: {}]
  %s7 = sld [smem:[#allocation0]]
  $region57: #{tpu_custom_call.1} parent=0
    _
  %s9 = ssub.s32 1, %s7
  %s10 = scalar_select 0, %s9, %s7
  $region1: #{tpu_custom_call.1} parent=0
    #allocation2 [shape = 'u8[16384]{0}', space=vmem, size = 0x4000, scoped, tag = 'output window, operand 0']
    #allocation3 [shape = 's32[2]{0}', space=sflag, size = 0x8, scoped, tag = 'scoped memory for tpu_custom_call.1']
    %11 = vsyncpa [#allocation3], 0
    %s12 = scalar_lea.sflag [#allocation3], 1
    %13 = vsyncpa %s12, 0
    loop: start=0, step=1, limit=4
    $region2: #{tpu_custom_call.1} parent=1 // loop_pre_header
      _
    $region3: #{tpu_custom_call.1} parent=1 // loop_header
      %s15 = sphi 0, %s19
      %p16 = scmp.ge.s32.totalorder %s15, 4
      %s25 = sphi 0, %s27
      %s28 = sphi 0, %s25
      %s29 = sphi 0, %s28
      %s45 = sphi 0, %s29
      %s51 = sphi 0, %s53
      %s54 = sphi 0, %s51
      %s55 = sphi 0, %s54
      %s71 = sphi 0, %s55
      %s75 = sphi 0, %s75
      %s77 = sphi 0, %s75
      %s78 = sphi 0, %s77
      %s92 = sphi 0, %s78
      %s96 = sphi 0, %s96
      %s98 = sphi 0, %s96
      %s99 = sphi 0, %s98
      %s113 = sphi 0, %s99
      %s117 = sphi 0, %s117
      %s119 = sphi 0, %s117
      %s120 = sphi 0, %s119
      %s134 = sphi 0, %s120
      %s138 = sphi 0, %s138
      %s140 = sphi 0, %s138
      %s141 = sphi 0, %s140
      %s155 = sphi 0, %s141
      %s161 = sphi 0, %s163
      %s164 = sphi 0, %s161
      %s165 = sphi 0, %s164
      %s181 = sphi 0, %s165
    $region4: #{tpu_custom_call.1} parent=1 // loop_header_branch
      %18 = sbr.rel (%p16) target = $region8
    $region5: #{tpu_custom_call.1} parent=1 // loop_body
      %s20 = ssub.s32 %s15, 1
      %s21 = ssub.s32 %s15, 2
      %s22 = sadd.s32 %s15, 1
      %s23 = ssub.s32 %s15, %s22
      %p24 = scmp.eq.s32.totalorder %s23, 0
      %s26 = sadd.s32 %s25, 1
      %s27 = scalar_select %p24, %s25, %s26
      %p30 = pneg %p24
      %p31 = scmp.eq.s32.totalorder %s15, 1
      %p32 = por %p30, %p31
      %p33 = scmp.ne.s32.totalorder %s25, %s28
      %p34 = scmp.eq.s32.totalorder %s15, 0
      %p35 = por %p33, %p34
      %p36 = scmp.ne.s32.totalorder %s25, %s28
      %p37 = scmp.eq.s32.totalorder %s20, 1
      %p38 = por %p36, %p37
      %p39 = scmp.ne.s32.totalorder %s28, %s29
      %p40 = scmp.eq.s32.totalorder %s20, 0
      %p41 = por %p39, %p40
      %p42 = scmp.ne.s32.totalorder %s28, %s29
      %p43 = scmp.eq.s32.totalorder %s21, 1
      %p44 = por %p42, %p43
      %p46 = scmp.ne.s32.totalorder %s29, %s45
      %p47 = scmp.eq.s32.totalorder %s21, 0
      %p48 = por %p46, %p47
      %s49 = ssub.s32 %s15, %s22
      %p50 = scmp.eq.s32.totalorder %s49, 0
      %s52 = sadd.s32 %s51, 1
      %s53 = scalar_select %p50, %s51, %s52
      %p56 = pneg %p50
      %p57 = scmp.eq.s32.totalorder %s15, 1
      %p58 = por %p56, %p57
      %p59 = scmp.ne.s32.totalorder %s51, %s54
      %p60 = scmp.eq.s32.totalorder %s15, 0
      %p61 = por %p59, %p60
      %p62 = scmp.ne.s32.totalorder %s51, %s54
      %p63 = scmp.eq.s32.totalorder %s20, 1
      %p64 = por %p62, %p63
      %p65 = scmp.ne.s32.totalorder %s54, %s55
      %p66 = scmp.eq.s32.totalorder %s20, 0
      %p67 = por %p65, %p66
      %p68 = scmp.ne.s32.totalorder %s54, %s55
      %p69 = scmp.eq.s32.totalorder %s21, 1
      %p70 = por %p68, %p69
      %p72 = scmp.ne.s32.totalorder %s55, %s71
      %p73 = scmp.eq.s32.totalorder %s21, 0
      %p74 = por %p72, %p73
      %s76 = sadd.s32 %s75, 1
      %p79 = scmp.eq.s32.totalorder %s15, 1
      %p80 = scmp.ne.s32.totalorder %s75, %s77
      %p81 = scmp.eq.s32.totalorder %s15, 0
      %p82 = por %p80, %p81
      %p83 = scmp.ne.s32.totalorder %s75, %s77
      %p84 = scmp.eq.s32.totalorder %s20, 1
      %p85 = por %p83, %p84
      %p86 = scmp.ne.s32.totalorder %s77, %s78
      %p87 = scmp.eq.s32.totalorder %s20, 0
      %p88 = por %p86, %p87
      %p89 = scmp.ne.s32.totalorder %s77, %s78
      %p90 = scmp.eq.s32.totalorder %s21, 1
      %p91 = por %p89, %p90
      %p93 = scmp.ne.s32.totalorder %s78, %s92
      %p94 = scmp.eq.s32.totalorder %s21, 0
      %p95 = por %p93, %p94
      %s97 = sadd.s32 %s96, 1
      %p100 = scmp.eq.s32.totalorder %s15, 1
      %p101 = scmp.ne.s32.totalorder %s96, %s98
      %p102 = scmp.eq.s32.totalorder %s15, 0
      %p103 = por %p101, %p102
      %p104 = scmp.ne.s32.totalorder %s96, %s98
      %p105 = scmp.eq.s32.totalorder %s20, 1
      %p106 = por %p104, %p105
      %p107 = scmp.ne.s32.totalorder %s98, %s99
      %p108 = scmp.eq.s32.totalorder %s20, 0
      %p109 = por %p107, %p108
      %p110 = scmp.ne.s32.totalorder %s98, %s99
      %p111 = scmp.eq.s32.totalorder %s21, 1
      %p112 = por %p110, %p111
      %p114 = scmp.ne.s32.totalorder %s99, %s113
      %p115 = scmp.eq.s32.totalorder %s21, 0
      %p116 = por %p114, %p115
      %s118 = sadd.s32 %s117, 1
      %p121 = scmp.eq.s32.totalorder %s15, 1
      %p122 = scmp.ne.s32.totalorder %s117, %s119
      %p123 = scmp.eq.s32.totalorder %s15, 0
      %p124 = por %p122, %p123
      %p125 = scmp.ne.s32.totalorder %s117, %s119
      %p126 = scmp.eq.s32.totalorder %s20, 1
      %p127 = por %p125, %p126
      %p128 = scmp.ne.s32.totalorder %s119, %s120
      %p129 = scmp.eq.s32.totalorder %s20, 0
      %p130 = por %p128, %p129
      %p131 = scmp.ne.s32.totalorder %s119, %s120
      %p132 = scmp.eq.s32.totalorder %s21, 1
      %p133 = por %p131, %p132
      %p135 = scmp.ne.s32.totalorder %s120, %s134
      %p136 = scmp.eq.s32.totalorder %s21, 0
      %p137 = por %p135, %p136
      %s139 = sadd.s32 %s138, 1
      %p142 = scmp.eq.s32.totalorder %s15, 1
      %p143 = scmp.ne.s32.totalorder %s138, %s140
      %p144 = scmp.eq.s32.totalorder %s15, 0
      %p145 = por %p143, %p144
      %p146 = scmp.ne.s32.totalorder %s138, %s140
      %p147 = scmp.eq.s32.totalorder %s20, 1
      %p148 = por %p146, %p147
      %p149 = scmp.ne.s32.totalorder %s140, %s141
      %p150 = scmp.eq.s32.totalorder %s20, 0
      %p151 = por %p149, %p150
      %p152 = scmp.ne.s32.totalorder %s140, %s141
      %p153 = scmp.eq.s32.totalorder %s21, 1
      %p154 = por %p152, %p153
      %p156 = scmp.ne.s32.totalorder %s141, %s155
      %p157 = scmp.eq.s32.totalorder %s21, 0
      %p158 = por %p156, %p157
      %s159 = ssub.s32 %s15, %s22
      %p160 = scmp.eq.s32.totalorder %s159, 0
      %s162 = sadd.s32 %s161, 1
      %s163 = scalar_select %p160, %s161, %s162
      %p166 = pneg %p160
      %p167 = scmp.eq.s32.totalorder %s15, 1
      %p168 = por %p166, %p167
      %p169 = scmp.ne.s32.totalorder %s161, %s164
      %p170 = scmp.eq.s32.totalorder %s15, 0
      %p171 = por %p169, %p170
      %p172 = scmp.ne.s32.totalorder %s161, %s164
      %p173 = scmp.eq.s32.totalorder %s20, 1
      %p174 = por %p172, %p173
      %p175 = scmp.ne.s32.totalorder %s164, %s165
      %p176 = scmp.eq.s32.totalorder %s20, 0
      %p177 = por %p175, %p176
      %p178 = scmp.ne.s32.totalorder %s164, %s165
      %p179 = scmp.eq.s32.totalorder %s21, 1
      %p180 = por %p178, %p179
      %p182 = scmp.ne.s32.totalorder %s165, %s181
      %p183 = scmp.eq.s32.totalorder %s21, 0
      %p184 = por %p182, %p183
      %p185 = scmp.le.s32.totalorder 1, %s15
      %p186 = scmp.lt.s32.totalorder %s15, 3
      %p187 = pnand %p185, %p186
      %p188 = pneg %p187
      // Predicated region
      $region9: #{tpu_custom_call.1} parent=5 // pred_check
        _
      $region10: #{tpu_custom_call.1} parent=5 // pred_check_branch
        %190 = sbr.rel (%p187) target = $region12
      $region11: #{tpu_custom_call.1} parent=5 // pred_region
        %s191 = ssub.s32 %s15, 1
        // Predicated region
        $region13: #{tpu_custom_call.1} parent=11 // pred_check
          %p192 = pneg %p88
        $region14: #{tpu_custom_call.1} parent=11 // pred_check_branch
          %194 = sbr.rel (%p192) target = $region16
        $region15: #{tpu_custom_call.1} parent=11 // pred_region
          _
        $region16: #{tpu_custom_call.1} parent=11 // pred_fallthru
          _
        // Predicated region
        $region17: #{tpu_custom_call.1} parent=11 // pred_check
          %p195 = pneg %p109
        $region18: #{tpu_custom_call.1} parent=11 // pred_check_branch
          %197 = sbr.rel (%p195) target = $region20
        $region19: #{tpu_custom_call.1} parent=11 // pred_region
          _
        $region20: #{tpu_custom_call.1} parent=11 // pred_fallthru
          _
        // Predicated region
        $region21: #{tpu_custom_call.1} parent=11 // pred_check
          %p198 = pneg %p130
        $region22: #{tpu_custom_call.1} parent=11 // pred_check_branch
          %200 = sbr.rel (%p198) target = $region24
        $region23: #{tpu_custom_call.1} parent=11 // pred_region
          _
        $region24: #{tpu_custom_call.1} parent=11 // pred_fallthru
          _
        // Predicated region
        $region25: #{tpu_custom_call.1} parent=11 // pred_check
          %p201 = pneg %p151
        $region26: #{tpu_custom_call.1} parent=11 // pred_check_branch
          %203 = sbr.rel (%p201) target = $region28
        $region27: #{tpu_custom_call.1} parent=11 // pred_region
          _
        $region28: #{tpu_custom_call.1} parent=11 // pred_fallthru
          _
      $region12: #{tpu_custom_call.1} parent=5 // pred_fallthru
        _
      %p204 = scmp.lt.s32.totalorder %s15, 2
      // Predicated region
      $region29: #{tpu_custom_call.1} parent=5 // pred_check
        %p205 = pneg %p204
      $region30: #{tpu_custom_call.1} parent=5 // pred_check_branch
        %207 = sbr.rel (%p205) target = $region32
      $region31: #{tpu_custom_call.1} parent=5 // pred_region
        // Predicated region
        $region33: #{tpu_custom_call.1} parent=31 // pred_check
          %p208 = pneg %p35
        $region34: #{tpu_custom_call.1} parent=31 // pred_check_branch
          %210 = sbr.rel (%p208) target = $region36
        $region35: #{tpu_custom_call.1} parent=31 // pred_region
          %p211 = scmp.lt.s32.totalorder %s15, 1
          %s212 = scalar_select %p211, %s15, 1
          %s213 = smul.addr %s212, 32
          %s214 = smul.addr %s213, 8
          %s215 = scalar_lea.vmem %s0, %s214
        $region36: #{tpu_custom_call.1} parent=31 // pred_fallthru
          _
        // Predicated region
        $region37: #{tpu_custom_call.1} parent=31 // pred_check
          %p216 = pneg %p61
        $region38: #{tpu_custom_call.1} parent=31 // pred_check_branch
          %218 = sbr.rel (%p216) target = $region40
        $region39: #{tpu_custom_call.1} parent=31 // pred_region
          %p219 = scmp.lt.s32.totalorder %s15, 1
          %s220 = scalar_select %p219, %s15, 1
          %s221 = smul.addr %s220, 2
          %s222 = smul.addr %s221, 8
          %s223 = scalar_lea.vmem %s1, %s222
        $region40: #{tpu_custom_call.1} parent=31 // pred_fallthru
          _
      $region32: #{tpu_custom_call.1} parent=5 // pred_fallthru
        _
      %p224 = scmp.le.s32.totalorder 1, %s15
      %p225 = scmp.lt.s32.totalorder %s15, 3
      %p226 = pnand %p224, %p225
      %p227 = pneg %p226
      // Predicated region
      $region41: #{tpu_custom_call.1} parent=5 // pred_check
        _
      $region42: #{tpu_custom_call.1} parent=5 // pred_check_branch
        %229 = sbr.rel (%p226) target = $region44
      $region43: #{tpu_custom_call.1} parent=5 // pred_region
        %s230 = ssub.s32 %s15, 1
        %p231 = scmp.lt.s32.totalorder %s20, 1
        %s232 = scalar_select %p231, %s20, 1
        %s233 = smul.addr %s232, 32
        %s234 = smul.addr %s233, 8
        %s235 = scalar_lea.vmem %s0, %s234
        %p236 = pneg %p41
        %p237 = pneg %p38
        %p238 = scmp.lt.s32.totalorder %s20, 1
        %s239 = scalar_select %p238, %s20, 1
        %s240 = smul.addr %s239, 2
        %s241 = smul.addr %s240, 8
        %s242 = scalar_lea.vmem %s1, %s241
        %p243 = pneg %p67
        %p244 = pneg %p64
        %p245 = pneg %p88
        %p246 = pneg %p85
        %p247 = pneg %p109
        %p248 = pneg %p106
        %p249 = pneg %p130
        %p250 = pneg %p127
        %p251 = pneg %p151
        %p252 = pneg %p148
        %p253 = pneg %p177
        %p254 = pneg %p174
        %s255 = sand.u32 %s164, 1
        %s256 = scalar_lea.sflag [#allocation3], %s255
        %s257 = sand.u32 %s164, 1
        %s258 = smul.addr %s257, 16
        %s259 = scalar_lea.vmem [#allocation2], %s258
        %p260 = scmp.lt.s32.totalorder %s20, 1
        %s261 = scalar_select %p260, %s20, 1
        %s262 = smul.addr %s261, 32
        %s263 = smul.addr %s262, 8
        %s264 = scalar_lea.vmem %s0, %s263
        %p265 = scmp.lt.s32.totalorder %s20, 1
        %s266 = scalar_select %p265, %s20, 1
        %s267 = smul.addr %s266, 2
        %s268 = smul.addr %s267, 8
        %s269 = scalar_lea.vmem %s1, %s268
        %v270 = vld [vmem:[%s264] sm:$0xff]
        %v271 = vld [vmem:[%s264 + $0x8] sm:$0xff]
        %v272 = vld [vmem:[%s264 + $0x10] sm:$0xff]
        %v273 = vld [vmem:[%s264 + $0x18] sm:$0xff]
        %v274 = vld [vmem:[%s264 + $0x20] sm:$0xff]
        %v275 = vld [vmem:[%s264 + $0x28] sm:$0xff]
        %v276 = vld [vmem:[%s264 + $0x30] sm:$0xff]
        %v277 = vld [vmem:[%s264 + $0x38] sm:$0xff]
        %v278 = vld [vmem:[%s264 + $0x40] sm:$0xff]
        %v279 = vld [vmem:[%s264 + $0x48] sm:$0xff]
        %v280 = vld [vmem:[%s264 + $0x50] sm:$0xff]
        %v281 = vld [vmem:[%s264 + $0x58] sm:$0xff]
        %v282 = vld [vmem:[%s264 + $0x60] sm:$0xff]
        %v283 = vld [vmem:[%s264 + $0x68] sm:$0xff]
        %v284 = vld [vmem:[%s264 + $0x70] sm:$0xff]
        %v285 = vld [vmem:[%s264 + $0x78] sm:$0xff]
        %v286 = vld [vmem:[%s264 + $0x80] sm:$0xff]
        %v287 = vld [vmem:[%s264 + $0x88] sm:$0xff]
        %v288 = vld [vmem:[%s264 + $0x90] sm:$0xff]
        %v289 = vld [vmem:[%s264 + $0x98] sm:$0xff]
        %v290 = vld [vmem:[%s264 + $0xa0] sm:$0xff]
        %v291 = vld [vmem:[%s264 + $0xa8] sm:$0xff]
        %v292 = vld [vmem:[%s264 + $0xb0] sm:$0xff]
        %v293 = vld [vmem:[%s264 + $0xb8] sm:$0xff]
        %v294 = vld [vmem:[%s264 + $0xc0] sm:$0xff]
        %v295 = vld [vmem:[%s264 + $0xc8] sm:$0xff]
        %v296 = vld [vmem:[%s264 + $0xd0] sm:$0xff]
        %v297 = vld [vmem:[%s264 + $0xd8] sm:$0xff]
        %v298 = vld [vmem:[%s264 + $0xe0] sm:$0xff]
        %v299 = vld [vmem:[%s264 + $0xe8] sm:$0xff]
        %v300 = vld [vmem:[%s264 + $0xf0] sm:$0xff]
        %v301 = vld [vmem:[%s264 + $0xf8] sm:$0xff]
        %v302 = vld [vmem:[%s269] sm:$0xff]
        %v303 = vld [vmem:[%s269 + $0x8] sm:$0xff]
        %v304 = vld [vmem:[%s2] sm:$0xff]
        %v305 = vld [vmem:[%s3] sm:$0x1]
        %v307 = vlaneseq
        %v308 = vshrl.u32 %v307, 7
        %v309 = vsub.s32 0, %v308
        %v310 = vrot.slane %v305, %v309
        %vm312 = vcmask 64512
        %v314 = vsel %vm312, %v270, 0
        %v317 = vsel %vm312, %v271, 0
        %v320 = vsel %vm312, %v272, 0
        %v323 = vsel %vm312, %v273, 0
        %v326 = vsel %vm312, %v274, 0
        %v329 = vsel %vm312, %v275, 0
        %v332 = vsel %vm312, %v276, 0
        %v335 = vsel %vm312, %v277, 0
        %v338 = vsel %vm312, %v278, 0
        %v341 = vsel %vm312, %v279, 0
        %v344 = vsel %vm312, %v280, 0
        %v347 = vsel %vm312, %v281, 0
        %v350 = vsel %vm312, %v282, 0
        %v353 = vsel %vm312, %v283, 0
        %v356 = vsel %vm312, %v284, 0
        %v359 = vsel %vm312, %v285, 0
        %v362 = vsel %vm312, %v286, 0
        %v365 = vsel %vm312, %v287, 0
        %v368 = vsel %vm312, %v288, 0
        %v371 = vsel %vm312, %v289, 0
        %v374 = vsel %vm312, %v290, 0
        %v377 = vsel %vm312, %v291, 0
        %v380 = vsel %vm312, %v292, 0
        %v383 = vsel %vm312, %v293, 0
        %v386 = vsel %vm312, %v294, 0
        %v389 = vsel %vm312, %v295, 0
        %v392 = vsel %vm312, %v296, 0
        %v395 = vsel %vm312, %v297, 0
        %v398 = vsel %vm312, %v298, 0
        %v401 = vsel %vm312, %v299, 0
        %v404 = vsel %vm312, %v300, 0
        %v407 = vsel %vm312, %v301, 0
        %409 = vmatprep.subr.mxu0 0.0
        %410 = vmatpush1.msra.mxu0 %v304
        %411 = vmatprep.subr.mxu0 0.0
        %412 = vmatpush1.msra.mxu0 0.0
        %413 = vmatprep.subr.mxu0 0.0
        %414 = vmatpush1.msra.mxu0 0.0
        %415 = vmatprep.subr.mxu0 0.0
        %416 = vmatpush1.msra.mxu0 0.0
        %417 = vmatprep.subr.mxu0 0.0
        %418 = vmatpush1.msra.mxu0 0.0
        %419 = vmatprep.subr.mxu0 0.0
        %420 = vmatpush1.msra.mxu0 0.0
        %421 = vmatprep.subr.mxu0 0.0
        %422 = vmatpush1.msra.mxu0 0.0
        %423 = vmatprep.subr.mxu0 0.0
        %424 = vmatpush1.msra.mxu0 0.0
        %425 = vmatprep.subr.mxu0 0.0
        %426 = vmatpush1.msra.mxu0 0.0
        %427 = vmatprep.subr.mxu0 0.0
        %428 = vmatpush1.msra.mxu0 0.0
        %429 = vmatprep.subr.mxu0 0.0
        %430 = vmatpush1.msra.mxu0 0.0
        %431 = vmatprep.subr.mxu0 0.0
        %432 = vmatpush1.msra.mxu0 0.0
        %433 = vmatprep.subr.mxu0 0.0
        %434 = vmatpush1.msra.mxu0 0.0
        %435 = vmatprep.subr.mxu0 0.0
        %436 = vmatpush1.msra.mxu0 0.0
        %437 = vmatprep.subr.mxu0 0.0
        %438 = vmatpush1.msra.mxu0 0.0
        %439 = vmatprep.subr.mxu0 0.0
        %440 = vmatpush1.msra.mxu0 0.0
        %441 = vmatprep.subr.mxu0 0.0
        %442 = vmatpush1.msra.mxu0 0.0
        %443 = vmatprep.subr.mxu0 0.0
        %444 = vmatpush1.msra.mxu0 0.0
        %445 = vmatprep.subr.mxu0 0.0
        %446 = vmatpush1.msra.mxu0 0.0
        %447 = vmatprep.subr.mxu0 0.0
        %448 = vmatpush1.msra.mxu0 0.0
        %449 = vmatprep.subr.mxu0 0.0
        %450 = vmatpush1.msra.mxu0 0.0
        %451 = vmatprep.subr.mxu0 0.0
        %452 = vmatpush1.msra.mxu0 0.0
        %453 = vmatprep.subr.mxu0 0.0
        %454 = vmatpush1.msra.mxu0 0.0
        %455 = vmatprep.subr.mxu0 0.0
        %456 = vmatpush1.msra.mxu0 0.0
        %457 = vmatprep.subr.mxu0 0.0
        %458 = vmatpush1.msra.mxu0 0.0
        %459 = vmatprep.subr.mxu0 0.0
        %460 = vmatpush1.msra.mxu0 0.0
        %461 = vmatprep.subr.mxu0 0.0
        %462 = vmatpush1.msra.mxu0 0.0
        %463 = vmatprep.subr.mxu0 0.0
        %464 = vmatpush1.msra.mxu0 0.0
        %465 = vmatprep.subr.mxu0 0.0
        %466 = vmatpush1.msra.mxu0 0.0
        %467 = vmatprep.subr.mxu0 0.0
        %468 = vmatpush1.msra.mxu0 0.0
        %469 = vmatprep.subr.mxu0 0.0
        %470 = vmatpush1.msra.mxu0 0.0
        %471 = vmatprep.subr.mxu0 0.0
        %472 = vmatpush1.msra.mxu0 0.0
        %473 = vmatprep.mubr.f32.mxu0 0.0
        %474 = vmatmul.mubr.f32.gmra.mrb[0].mxu0 %v314
        %v475 = vpop.f32.mrb[0].mxu0
        %v476 = vadd.f32 %v310, %v475
        %v477 = vpop.f32.mrb[0].mxu0
        %478 = vmatprep.mubr.f32.mxu0 0.0
        %479 = vmatmul.mubr.f32.gmra.mrb[0].mxu0 %v317
        %v480 = vpop.f32.mrb[0].mxu0
        %v481 = vadd.f32 %v310, %v480
        %v482 = vpop.f32.mrb[0].mxu0
        %483 = vmatprep.mubr.f32.mxu0 0.0
        %484 = vmatmul.mubr.f32.gmra.mrb[0].mxu0 %v320
        %v485 = vpop.f32.mrb[0].mxu0
        %v486 = vadd.f32 %v310, %v485
        %v487 = vpop.f32.mrb[0].mxu0
        %488 = vmatprep.mubr.f32.mxu0 0.0
        %489 = vmatmul.mubr.f32.gmra.mrb[0].mxu0 %v323
        %v490 = vpop.f32.mrb[0].mxu0
        %v491 = vadd.f32 %v310, %v490
        %v492 = vpop.f32.mrb[0].mxu0
        %493 = vmatprep.mubr.f32.mxu0 0.0
        %494 = vmatmul.mubr.f32.gmra.mrb[0].mxu0 %v326
        %v495 = vpop.f32.mrb[0].mxu0
        %v496 = vadd.f32 %v310, %v495
        %v497 = vpop.f32.mrb[0].mxu0
        %498 = vmatprep.mubr.f32.mxu0 0.0
        %499 = vmatmul.mubr.f32.gmra.mrb[0].mxu0 %v329
        %v500 = vpop.f32.mrb[0].mxu0
        %v501 = vadd.f32 %v310, %v500
        %v502 = vpop.f32.mrb[0].mxu0
        %503 = vmatprep.mubr.f32.mxu0 0.0
        %504 = vmatmul.mubr.f32.gmra.mrb[0].mxu0 %v332
        %v505 = vpop.f32.mrb[0].mxu0
        %v506 = vadd.f32 %v310, %v505
        %v507 = vpop.f32.mrb[0].mxu0
        %508 = vmatprep.mubr.f32.mxu0 0.0
        %509 = vmatmul.mubr.f32.gmra.mrb[0].mxu0 %v335
        %v510 = vpop.f32.mrb[0].mxu0
        %v511 = vadd.f32 %v310, %v510
        %v512 = vpop.f32.mrb[0].mxu0
        %513 = vmatprep.mubr.f32.mxu0 0.0
        %514 = vmatmul.mubr.f32.gmra.mrb[0].mxu0 %v338
        %v515 = vpop.f32.mrb[0].mxu0
        %v516 = vadd.f32 %v310, %v515
        %v517 = vpop.f32.mrb[0].mxu0
        %518 = vmatprep.mubr.f32.mxu0 0.0
        %519 = vmatmul.mubr.f32.gmra.mrb[0].mxu0 %v341
        %v520 = vpop.f32.mrb[0].mxu0
        %v521 = vadd.f32 %v310, %v520
        %v522 = vpop.f32.mrb[0].mxu0
        %523 = vmatprep.mubr.f32.mxu0 0.0
        %524 = vmatmul.mubr.f32.gmra.mrb[0].mxu0 %v344
        %v525 = vpop.f32.mrb[0].mxu0
        %v526 = vadd.f32 %v310, %v525
        %v527 = vpop.f32.mrb[0].mxu0
        %528 = vmatprep.mubr.f32.mxu0 0.0
        %529 = vmatmul.mubr.f32.gmra.mrb[0].mxu0 %v347
        %v530 = vpop.f32.mrb[0].mxu0
        %v531 = vadd.f32 %v310, %v530
        %v532 = vpop.f32.mrb[0].mxu0
        %533 = vmatprep.mubr.f32.mxu0 0.0
        %534 = vmatmul.mubr.f32.gmra.mrb[0].mxu0 %v350
        %v535 = vpop.f32.mrb[0].mxu0
        %v536 = vadd.f32 %v310, %v535
        %v537 = vpop.f32.mrb[0].mxu0
        %538 = vmatprep.mubr.f32.mxu0 0.0
        %539 = vmatmul.mubr.f32.gmra.mrb[0].mxu0 %v353
        %v540 = vpop.f32.mrb[0].mxu0
        %v541 = vadd.f32 %v310, %v540
        %v542 = vpop.f32.mrb[0].mxu0
        %543 = vmatprep.mubr.f32.mxu0 0.0
        %544 = vmatmul.mubr.f32.gmra.mrb[0].mxu0 %v356
        %v545 = vpop.f32.mrb[0].mxu0
        %v546 = vadd.f32 %v310, %v545
        %v547 = vpop.f32.mrb[0].mxu0
        %548 = vmatprep.mubr.f32.mxu0 0.0
        %549 = vmatmul.mubr.f32.gmra.mrb[0].mxu0 %v359
        %v550 = vpop.f32.mrb[0].mxu0
        %v551 = vadd.f32 %v310, %v550
        %v552 = vpop.f32.mrb[0].mxu0
        %553 = vmatprep.mubr.f32.mxu0 0.0
        %554 = vmatmul.mubr.f32.gmra.mrb[0].mxu0 %v362
        %v555 = vpop.f32.mrb[0].mxu0
        %v556 = vadd.f32 %v310, %v555
        %v557 = vpop.f32.mrb[0].mxu0
        %558 = vmatprep.mubr.f32.mxu0 0.0
        %559 = vmatmul.mubr.f32.gmra.mrb[0].mxu0 %v365
        %v560 = vpop.f32.mrb[0].mxu0
        %v561 = vadd.f32 %v310, %v560
        %v562 = vpop.f32.mrb[0].mxu0
        %563 = vmatprep.mubr.f32.mxu0 0.0
        %564 = vmatmul.mubr.f32.gmra.mrb[0].mxu0 %v368
        %v565 = vpop.f32.mrb[0].mxu0
        %v566 = vadd.f32 %v310, %v565
        %v567 = vpop.f32.mrb[0].mxu0
        %568 = vmatprep.mubr.f32.mxu0 0.0
        %569 = vmatmul.mubr.f32.gmra.mrb[0].mxu0 %v371
        %v570 = vpop.f32.mrb[0].mxu0
        %v571 = vadd.f32 %v310, %v570
        %v572 = vpop.f32.mrb[0].mxu0
        %573 = vmatprep.mubr.f32.mxu0 0.0
        %574 = vmatmul.mubr.f32.gmra.mrb[0].mxu0 %v374
        %v575 = vpop.f32.mrb[0].mxu0
        %v576 = vadd.f32 %v310, %v575
        %v577 = vpop.f32.mrb[0].mxu0
        %578 = vmatprep.mubr.f32.mxu0 0.0
        %579 = vmatmul.mubr.f32.gmra.mrb[0].mxu0 %v377
        %v580 = vpop.f32.mrb[0].mxu0
        %v581 = vadd.f32 %v310, %v580
        %v582 = vpop.f32.mrb[0].mxu0
        %583 = vmatprep.mubr.f32.mxu0 0.0
        %584 = vmatmul.mubr.f32.gmra.mrb[0].mxu0 %v380
        %v585 = vpop.f32.mrb[0].mxu0
        %v586 = vadd.f32 %v310, %v585
        %v587 = vpop.f32.mrb[0].mxu0
        %588 = vmatprep.mubr.f32.mxu0 0.0
        %589 = vmatmul.mubr.f32.gmra.mrb[0].mxu0 %v383
        %v590 = vpop.f32.mrb[0].mxu0
        %v591 = vadd.f32 %v310, %v590
        %v592 = vpop.f32.mrb[0].mxu0
        %593 = vmatprep.mubr.f32.mxu0 0.0
        %594 = vmatmul.mubr.f32.gmra.mrb[0].mxu0 %v386
        %v595 = vpop.f32.mrb[0].mxu0
        %v596 = vadd.f32 %v310, %v595
        %v597 = vpop.f32.mrb[0].mxu0
        %598 = vmatprep.mubr.f32.mxu0 0.0
        %599 = vmatmul.mubr.f32.gmra.mrb[0].mxu0 %v389
        %v600 = vpop.f32.mrb[0].mxu0
        %v601 = vadd.f32 %v310, %v600
        %v602 = vpop.f32.mrb[0].mxu0
        %603 = vmatprep.mubr.f32.mxu0 0.0
        %604 = vmatmul.mubr.f32.gmra.mrb[0].mxu0 %v392
        %v605 = vpop.f32.mrb[0].mxu0
        %v606 = vadd.f32 %v310, %v605
        %v607 = vpop.f32.mrb[0].mxu0
        %608 = vmatprep.mubr.f32.mxu0 0.0
        %609 = vmatmul.mubr.f32.gmra.mrb[0].mxu0 %v395
        %v610 = vpop.f32.mrb[0].mxu0
        %v611 = vadd.f32 %v310, %v610
        %v612 = vpop.f32.mrb[0].mxu0
        %613 = vmatprep.mubr.f32.mxu0 0.0
        %614 = vmatmul.mubr.f32.gmra.mrb[0].mxu0 %v398
        %v615 = vpop.f32.mrb[0].mxu0
        %v616 = vadd.f32 %v310, %v615
        %v617 = vpop.f32.mrb[0].mxu0
        %618 = vmatprep.mubr.f32.mxu0 0.0
        %619 = vmatmul.mubr.f32.gmra.mrb[0].mxu0 %v401
        %v620 = vpop.f32.mrb[0].mxu0
        %v621 = vadd.f32 %v310, %v620
        %v622 = vpop.f32.mrb[0].mxu0
        %623 = vmatprep.mubr.f32.mxu0 0.0
        %624 = vmatmul.mubr.f32.gmra.mrb[0].mxu0 %v404
        %v625 = vpop.f32.mrb[0].mxu0
        %v626 = vadd.f32 %v310, %v625
        %v627 = vpop.f32.mrb[0].mxu0
        %628 = vmatprep.mubr.f32.mxu0 0.0
        %629 = vmatmul.mubr.f32.gmra.mrb[0].mxu0 %v407
        %v630 = vpop.f32.mrb[0].mxu0
        %v631 = vadd.f32 %v310, %v630
        %v632 = vpop.f32.mrb[0].mxu0
        %633 = vdwg.mxu0
        %v634 = vld [vmem:[%s4] sm:$0xff]
        %v635 = vld [vmem:[%s5] sm:$0xff]
        %637 = vset.pattern.permute.xlu0 0
        %638 = vperm.xlu0 %637, %v635
        %v639 = vpop.permute.xlu0 %638
        %v642 = vsel %vm312, %v634, 0
        %644 = vmatprep.subr.mxu0 %v303
        %645 = vmatpush1.msra.mxu0 %v302
        %646 = vmatprep.subr.mxu0 0.0
        %647 = vmatpush1.msra.mxu0 0.0
        %648 = vmatprep.subr.mxu0 0.0
        %649 = vmatpush1.msra.mxu0 0.0
        %650 = vmatprep.subr.mxu0 0.0
        %651 = vmatpush1.msra.mxu0 0.0
        %652 = vmatprep.subr.mxu0 0.0
        %653 = vmatpush1.msra.mxu0 0.0
        %654 = vmatprep.subr.mxu0 0.0
        %655 = vmatpush1.msra.mxu0 0.0
        %656 = vmatprep.subr.mxu0 0.0
        %657 = vmatpush1.msra.mxu0 0.0
        %658 = vmatprep.subr.mxu0 0.0
        %659 = vmatpush1.msra.mxu0 0.0
        %660 = vmatprep.subr.mxu0 0.0
        %661 = vmatpush1.msra.mxu0 0.0
        %662 = vmatprep.subr.mxu0 0.0
        %663 = vmatpush1.msra.mxu0 0.0
        %664 = vmatprep.subr.mxu0 0.0
        %665 = vmatpush1.msra.mxu0 0.0
        %666 = vmatprep.subr.mxu0 0.0
        %667 = vmatpush1.msra.mxu0 0.0
        %668 = vmatprep.subr.mxu0 0.0
        %669 = vmatpush1.msra.mxu0 0.0
        %670 = vmatprep.subr.mxu0 0.0
        %671 = vmatpush1.msra.mxu0 0.0
        %672 = vmatprep.subr.mxu0 0.0
        %673 = vmatpush1.msra.mxu0 0.0
        %674 = vmatprep.subr.mxu0 0.0
        %675 = vmatpush1.msra.mxu0 0.0
        %676 = vmatprep.subr.mxu0 0.0
        %677 = vmatpush1.msra.mxu0 0.0
        %678 = vmatprep.subr.mxu0 0.0
        %679 = vmatpush1.msra.mxu0 0.0
        %680 = vmatprep.subr.mxu0 0.0
        %681 = vmatpush1.msra.mxu0 0.0
        %682 = vmatprep.subr.mxu0 0.0
        %683 = vmatpush1.msra.mxu0 0.0
        %684 = vmatprep.subr.mxu0 0.0
        %685 = vmatpush1.msra.mxu0 0.0
        %686 = vmatprep.subr.mxu0 0.0
        %687 = vmatpush1.msra.mxu0 0.0
        %688 = vmatprep.subr.mxu0 0.0
        %689 = vmatpush1.msra.mxu0 0.0
        %690 = vmatprep.subr.mxu0 0.0
        %691 = vmatpush1.msra.mxu0 0.0
        %692 = vmatprep.subr.mxu0 0.0
        %693 = vmatpush1.msra.mxu0 0.0
        %694 = vmatprep.subr.mxu0 0.0
        %695 = vmatpush1.msra.mxu0 0.0
        %696 = vmatprep.subr.mxu0 0.0
        %697 = vmatpush1.msra.mxu0 0.0
        %698 = vmatprep.subr.mxu0 0.0
        %699 = vmatpush1.msra.mxu0 0.0
        %700 = vmatprep.subr.mxu0 0.0
        %701 = vmatpush1.msra.mxu0 0.0
        %702 = vmatprep.subr.mxu0 0.0
        %703 = vmatpush1.msra.mxu0 0.0
        %704 = vmatprep.subr.mxu0 0.0
        %705 = vmatpush1.msra.mxu0 0.0
        %706 = vmatprep.subr.mxu0 0.0
        %707 = vmatpush1.msra.mxu0 0.0
        %708 = vmatprep.mubr.f32.mxu0 0.0
        %709 = vmatmul.mubr.f32.gmra.mrb[0].mxu0 %v642
        %v710 = vpop.f32.mrb[0].mxu0
        %v711 = vadd.f32 %v639, %v710
        %v712 = vpop.f32.mrb[0].mxu0
        %v713 = vadd.f32 %v639, %v712
        %714 = vdwg.mxu0
        %v715 = vmul.f32 %v476, 0.35355338
        %v716 = vmul.f32 %v481, 0.35355338
        %v717 = vmul.f32 %v486, 0.35355338
        %v718 = vmul.f32 %v491, 0.35355338
        %v719 = vmul.f32 %v496, 0.35355338
        %v720 = vmul.f32 %v501, 0.35355338
        %v721 = vmul.f32 %v506, 0.35355338
        %v722 = vmul.f32 %v511, 0.35355338
        %v723 = vmul.f32 %v516, 0.35355338
        %v724 = vmul.f32 %v521, 0.35355338
        %v725 = vmul.f32 %v526, 0.35355338
        %v726 = vmul.f32 %v531, 0.35355338
        %v727 = vmul.f32 %v536, 0.35355338
        %v728 = vmul.f32 %v541, 0.35355338
        %v729 = vmul.f32 %v546, 0.35355338
        %v730 = vmul.f32 %v551, 0.35355338
        %v731 = vmul.f32 %v556, 0.35355338
        %v732 = vmul.f32 %v561, 0.35355338
        %v733 = vmul.f32 %v566, 0.35355338
        %v734 = vmul.f32 %v571, 0.35355338
        %v735 = vmul.f32 %v576, 0.35355338
        %v736 = vmul.f32 %v581, 0.35355338
        %v737 = vmul.f32 %v586, 0.35355338
        %v738 = vmul.f32 %v591, 0.35355338
        %v739 = vmul.f32 %v596, 0.35355338
        %v740 = vmul.f32 %v601, 0.35355338
        %v741 = vmul.f32 %v606, 0.35355338
        %v742 = vmul.f32 %v611, 0.35355338
        %v743 = vmul.f32 %v616, 0.35355338
        %v744 = vmul.f32 %v621, 0.35355338
        %v745 = vmul.f32 %v626, 0.35355338
        %v746 = vmul.f32 %v631, 0.35355338
        %779 = vrot.lane.b32.xlu0 %v476, 120
        %v780 = vpop.permute.xlu0 %779
        %781 = vrot.lane.b32.xlu0 %v481, 120
        %v782 = vpop.permute.xlu0 %781
        %783 = vrot.lane.b32.xlu0 %v486, 120
        %v784 = vpop.permute.xlu0 %783
        %785 = vrot.lane.b32.xlu0 %v491, 120
        %v786 = vpop.permute.xlu0 %785
        %787 = vrot.lane.b32.xlu0 %v496, 120
        %v788 = vpop.permute.xlu0 %787
        %789 = vrot.lane.b32.xlu0 %v501, 120
        %v790 = vpop.permute.xlu0 %789
        %791 = vrot.lane.b32.xlu0 %v506, 120
        %v792 = vpop.permute.xlu0 %791
        %793 = vrot.lane.b32.xlu0 %v511, 120
        %v794 = vpop.permute.xlu0 %793
        %795 = vrot.lane.b32.xlu0 %v516, 120
        %v796 = vpop.permute.xlu0 %795
        %797 = vrot.lane.b32.xlu0 %v521, 120
        %v798 = vpop.permute.xlu0 %797
        %799 = vrot.lane.b32.xlu0 %v526, 120
        %v800 = vpop.permute.xlu0 %799
        %801 = vrot.lane.b32.xlu0 %v531, 120
        %v802 = vpop.permute.xlu0 %801
        %803 = vrot.lane.b32.xlu0 %v536, 120
        %v804 = vpop.permute.xlu0 %803
        %805 = vrot.lane.b32.xlu0 %v541, 120
        %v806 = vpop.permute.xlu0 %805
        %807 = vrot.lane.b32.xlu0 %v546, 120
        %v808 = vpop.permute.xlu0 %807
        %809 = vrot.lane.b32.xlu0 %v551, 120
        %v810 = vpop.permute.xlu0 %809
        %811 = vrot.lane.b32.xlu0 %v556, 120
        %v812 = vpop.permute.xlu0 %811
        %813 = vrot.lane.b32.xlu0 %v561, 120
        %v814 = vpop.permute.xlu0 %813
        %815 = vrot.lane.b32.xlu0 %v566, 120
        %v816 = vpop.permute.xlu0 %815
        %817 = vrot.lane.b32.xlu0 %v571, 120
        %v818 = vpop.permute.xlu0 %817
        %819 = vrot.lane.b32.xlu0 %v576, 120
        %v820 = vpop.permute.xlu0 %819
        %821 = vrot.lane.b32.xlu0 %v581, 120
        %v822 = vpop.permute.xlu0 %821
        %823 = vrot.lane.b32.xlu0 %v586, 120
        %v824 = vpop.permute.xlu0 %823
        %825 = vrot.lane.b32.xlu0 %v591, 120
        %v826 = vpop.permute.xlu0 %825
        %827 = vrot.lane.b32.xlu0 %v596, 120
        %v828 = vpop.permute.xlu0 %827
        %829 = vrot.lane.b32.xlu0 %v601, 120
        %v830 = vpop.permute.xlu0 %829
        %831 = vrot.lane.b32.xlu0 %v606, 120
        %v832 = vpop.permute.xlu0 %831
        %833 = vrot.lane.b32.xlu0 %v611, 120
        %v834 = vpop.permute.xlu0 %833
        %835 = vrot.lane.b32.xlu0 %v616, 120
        %v836 = vpop.permute.xlu0 %835
        %837 = vrot.lane.b32.xlu0 %v621, 120
        %v838 = vpop.permute.xlu0 %837
        %839 = vrot.lane.b32.xlu0 %v626, 120
        %v840 = vpop.permute.xlu0 %839
        %841 = vrot.lane.b32.xlu0 %v631, 120
        %v842 = vpop.permute.xlu0 %841
        %vm843 = vcmask 31744
        %v845 = vsel %vm843, %v715, 0
        %v848 = vsel %vm843, %v716, 0
        %v851 = vsel %vm843, %v717, 0
        %v854 = vsel %vm843, %v718, 0
        %v857 = vsel %vm843, %v719, 0
        %v860 = vsel %vm843, %v720, 0
        %v863 = vsel %vm843, %v721, 0
        %v866 = vsel %vm843, %v722, 0
        %v869 = vsel %vm843, %v723, 0
        %v872 = vsel %vm843, %v724, 0
        %v875 = vsel %vm843, %v725, 0
        %v878 = vsel %vm843, %v726, 0
        %v881 = vsel %vm843, %v727, 0
        %v884 = vsel %vm843, %v728, 0
        %v887 = vsel %vm843, %v729, 0
        %v890 = vsel %vm843, %v730, 0
        %v893 = vsel %vm843, %v731, 0
        %v896 = vsel %vm843, %v732, 0
        %v899 = vsel %vm843, %v733, 0
        %v902 = vsel %vm843, %v734, 0
        %v905 = vsel %vm843, %v735, 0
        %v908 = vsel %vm843, %v736, 0
        %v911 = vsel %vm843, %v737, 0
        %v914 = vsel %vm843, %v738, 0
        %v917 = vsel %vm843, %v739, 0
        %v920 = vsel %vm843, %v740, 0
        %v923 = vsel %vm843, %v741, 0
        %v926 = vsel %vm843, %v742, 0
        %v929 = vsel %vm843, %v743, 0
        %v932 = vsel %vm843, %v744, 0
        %v935 = vsel %vm843, %v745, 0
        %v938 = vsel %vm843, %v746, 0
        %v940 = vsel %vm843, %v780, 0
        %v942 = vsel %vm843, %v782, 0
        %v944 = vsel %vm843, %v784, 0
        %v946 = vsel %vm843, %v786, 0
        %v948 = vsel %vm843, %v788, 0
        %v950 = vsel %vm843, %v790, 0
        %v952 = vsel %vm843, %v792, 0
        %v954 = vsel %vm843, %v794, 0
        %v956 = vsel %vm843, %v796, 0
        %v958 = vsel %vm843, %v798, 0
        %v960 = vsel %vm843, %v800, 0
        %v962 = vsel %vm843, %v802, 0
        %v964 = vsel %vm843, %v804, 0
        %v966 = vsel %vm843, %v806, 0
        %v968 = vsel %vm843, %v808, 0
        %v970 = vsel %vm843, %v810, 0
        %v972 = vsel %vm843, %v812, 0
        %v974 = vsel %vm843, %v814, 0
        %v976 = vsel %vm843, %v816, 0
        %v978 = vsel %vm843, %v818, 0
        %v980 = vsel %vm843, %v820, 0
        %v982 = vsel %vm843, %v822, 0
        %v984 = vsel %vm843, %v824, 0
        %v986 = vsel %vm843, %v826, 0
        %v988 = vsel %vm843, %v828, 0
        %v990 = vsel %vm843, %v830, 0
        %v992 = vsel %vm843, %v832, 0
        %v994 = vsel %vm843, %v834, 0
        %v996 = vsel %vm843, %v836, 0
        %v998 = vsel %vm843, %v838, 0
        %v1000 = vsel %vm843, %v840, 0
        %v1002 = vsel %vm843, %v842, 0
        %1004 = vmatprep.subr.mxu0 0.0
        %1005 = vmatpush1.xpose.msra.mxu0 %v940
        %1006 = vmatprep.subr.mxu0 0.0
        %1007 = vmatpush1.xpose.msra.mxu0 %v942
        %1008 = vmatprep.subr.mxu0 0.0
        %1009 = vmatpush1.xpose.msra.mxu0 %v944
        %1010 = vmatprep.subr.mxu0 0.0
        %1011 = vmatpush1.xpose.msra.mxu0 %v946
        %1012 = vmatprep.subr.mxu0 0.0
        %1013 = vmatpush1.xpose.msra.mxu0 %v948
        %1014 = vmatprep.subr.mxu0 0.0
        %1015 = vmatpush1.xpose.msra.mxu0 %v950
        %1016 = vmatprep.subr.mxu0 0.0
        %1017 = vmatpush1.xpose.msra.mxu0 %v952
        %1018 = vmatprep.subr.mxu0 0.0
        %1019 = vmatpush1.xpose.msra.mxu0 %v954
        %1020 = vmatprep.subr.mxu0 0.0
        %1021 = vmatpush1.xpose.msra.mxu0 %v956
        %1022 = vmatprep.subr.mxu0 0.0
        %1023 = vmatpush1.xpose.msra.mxu0 %v958
        %1024 = vmatprep.subr.mxu0 0.0
        %1025 = vmatpush1.xpose.msra.mxu0 %v960
        %1026 = vmatprep.subr.mxu0 0.0
        %1027 = vmatpush1.xpose.msra.mxu0 %v962
        %1028 = vmatprep.subr.mxu0 0.0
        %1029 = vmatpush1.xpose.msra.mxu0 %v964
        %1030 = vmatprep.subr.mxu0 0.0
        %1031 = vmatpush1.xpose.msra.mxu0 %v966
        %1032 = vmatprep.subr.mxu0 0.0
        %1033 = vmatpush1.xpose.msra.mxu0 %v968
        %1034 = vmatprep.subr.mxu0 0.0
        %1035 = vmatpush1.xpose.msra.mxu0 %v970
        %1036 = vmatprep.subr.mxu0 0.0
        %1037 = vmatpush1.xpose.msra.mxu0 %v972
        %1038 = vmatprep.subr.mxu0 0.0
        %1039 = vmatpush1.xpose.msra.mxu0 %v974
        %1040 = vmatprep.subr.mxu0 0.0
        %1041 = vmatpush1.xpose.msra.mxu0 %v976
        %1042 = vmatprep.subr.mxu0 0.0
        %1043 = vmatpush1.xpose.msra.mxu0 %v978
        %1044 = vmatprep.subr.mxu0 0.0
        %1045 = vmatpush1.xpose.msra.mxu0 %v980
        %1046 = vmatprep.subr.mxu0 0.0
        %1047 = vmatpush1.xpose.msra.mxu0 %v982
        %1048 = vmatprep.subr.mxu0 0.0
        %1049 = vmatpush1.xpose.msra.mxu0 %v984
        %1050 = vmatprep.subr.mxu0 0.0
        %1051 = vmatpush1.xpose.msra.mxu0 %v986
        %1052 = vmatprep.subr.mxu0 0.0
        %1053 = vmatpush1.xpose.msra.mxu0 %v988
        %1054 = vmatprep.subr.mxu0 0.0
        %1055 = vmatpush1.xpose.msra.mxu0 %v990
        %1056 = vmatprep.subr.mxu0 0.0
        %1057 = vmatpush1.xpose.msra.mxu0 %v992
        %1058 = vmatprep.subr.mxu0 0.0
        %1059 = vmatpush1.xpose.msra.mxu0 %v994
        %1060 = vmatprep.subr.mxu0 0.0
        %1061 = vmatpush1.xpose.msra.mxu0 %v996
        %1062 = vmatprep.subr.mxu0 0.0
        %1063 = vmatpush1.xpose.msra.mxu0 %v998
        %1064 = vmatprep.subr.mxu0 0.0
        %1065 = vmatpush1.xpose.msra.mxu0 %v1000
        %1066 = vmatprep.subr.mxu0 0.0
        %1067 = vmatpush1.xpose.msra.mxu0 %v1002
        %1068 = vmatprep.mubr.f32.mxu0 0.0
        %1069 = vmatmul.mubr.f32.gmra.mrb[0].mxu0 %v845
        %v1070 = vpop.f32.mrb[0].mxu0
        %v1071 = vadd.f32 0.0, %v1070
        %v1072 = vpop.f32.mrb[0].mxu0
        %v1073 = vadd.f32 0.0, %v1072
        %1074 = vmatprep.mubr.f32.mxu0 0.0
        %1075 = vmatmul.mubr.f32.gmra.mrb[0].mxu0 %v848
        %v1076 = vpop.f32.mrb[0].mxu0
        %v1077 = vadd.f32 0.0, %v1076
        %v1078 = vpop.f32.mrb[0].mxu0
        %v1079 = vadd.f32 0.0, %v1078
        %1080 = vmatprep.mubr.f32.mxu0 0.0
        %1081 = vmatmul.mubr.f32.gmra.mrb[0].mxu0 %v851
        %v1082 = vpop.f32.mrb[0].mxu0
        %v1083 = vadd.f32 0.0, %v1082
        %v1084 = vpop.f32.mrb[0].mxu0
        %v1085 = vadd.f32 0.0, %v1084
        %1086 = vmatprep.mubr.f32.mxu0 0.0
        %1087 = vmatmul.mubr.f32.gmra.mrb[0].mxu0 %v854
        %v1088 = vpop.f32.mrb[0].mxu0
        %v1089 = vadd.f32 0.0, %v1088
        %v1090 = vpop.f32.mrb[0].mxu0
        %v1091 = vadd.f32 0.0, %v1090
        %1092 = vmatprep.mubr.f32.mxu0 0.0
        %1093 = vmatmul.mubr.f32.gmra.mrb[0].mxu0 %v857
        %v1094 = vpop.f32.mrb[0].mxu0
        %v1095 = vadd.f32 0.0, %v1094
        %v1096 = vpop.f32.mrb[0].mxu0
        %v1097 = vadd.f32 0.0, %v1096
        %1098 = vmatprep.mubr.f32.mxu0 0.0
        %1099 = vmatmul.mubr.f32.gmra.mrb[0].mxu0 %v860
        %v1100 = vpop.f32.mrb[0].mxu0
        %v1101 = vadd.f32 0.0, %v1100
        %v1102 = vpop.f32.mrb[0].mxu0
        %v1103 = vadd.f32 0.0, %v1102
        %1104 = vmatprep.mubr.f32.mxu0 0.0
        %1105 = vmatmul.mubr.f32.gmra.mrb[0].mxu0 %v863
        %v1106 = vpop.f32.mrb[0].mxu0
        %v1107 = vadd.f32 0.0, %v1106
        %v1108 = vpop.f32.mrb[0].mxu0
        %v1109 = vadd.f32 0.0, %v1108
        %1110 = vmatprep.mubr.f32.mxu0 0.0
        %1111 = vmatmul.mubr.f32.gmra.mrb[0].mxu0 %v866
        %v1112 = vpop.f32.mrb[0].mxu0
        %v1113 = vadd.f32 0.0, %v1112
        %v1114 = vpop.f32.mrb[0].mxu0
        %v1115 = vadd.f32 0.0, %v1114
        %1116 = vmatprep.mubr.f32.mxu0 0.0
        %1117 = vmatmul.mubr.f32.gmra.mrb[0].mxu0 %v869
        %v1118 = vpop.f32.mrb[0].mxu0
        %v1119 = vadd.f32 0.0, %v1118
        %v1120 = vpop.f32.mrb[0].mxu0
        %v1121 = vadd.f32 0.0, %v1120
        %1122 = vmatprep.mubr.f32.mxu0 0.0
        %1123 = vmatmul.mubr.f32.gmra.mrb[0].mxu0 %v872
        %v1124 = vpop.f32.mrb[0].mxu0
        %v1125 = vadd.f32 0.0, %v1124
        %v1126 = vpop.f32.mrb[0].mxu0
        %v1127 = vadd.f32 0.0, %v1126
        %1128 = vmatprep.mubr.f32.mxu0 0.0
        %1129 = vmatmul.mubr.f32.gmra.mrb[0].mxu0 %v875
        %v1130 = vpop.f32.mrb[0].mxu0
        %v1131 = vadd.f32 0.0, %v1130
        %v1132 = vpop.f32.mrb[0].mxu0
        %v1133 = vadd.f32 0.0, %v1132
        %1134 = vmatprep.mubr.f32.mxu0 0.0
        %1135 = vmatmul.mubr.f32.gmra.mrb[0].mxu0 %v878
        %v1136 = vpop.f32.mrb[0].mxu0
        %v1137 = vadd.f32 0.0, %v1136
        %v1138 = vpop.f32.mrb[0].mxu0
        %v1139 = vadd.f32 0.0, %v1138
        %1140 = vmatprep.mubr.f32.mxu0 0.0
        %1141 = vmatmul.mubr.f32.gmra.mrb[0].mxu0 %v881
        %v1142 = vpop.f32.mrb[0].mxu0
        %v1143 = vadd.f32 0.0, %v1142
        %v1144 = vpop.f32.mrb[0].mxu0
        %v1145 = vadd.f32 0.0, %v1144
        %1146 = vmatprep.mubr.f32.mxu0 0.0
        %1147 = vmatmul.mubr.f32.gmra.mrb[0].mxu0 %v884
        %v1148 = vpop.f32.mrb[0].mxu0
        %v1149 = vadd.f32 0.0, %v1148
        %v1150 = vpop.f32.mrb[0].mxu0
        %v1151 = vadd.f32 0.0, %v1150
        %1152 = vmatprep.mubr.f32.mxu0 0.0
        %1153 = vmatmul.mubr.f32.gmra.mrb[0].mxu0 %v887
        %v1154 = vpop.f32.mrb[0].mxu0
        %v1155 = vadd.f32 0.0, %v1154
        %v1156 = vpop.f32.mrb[0].mxu0
        %v1157 = vadd.f32 0.0, %v1156
        %1158 = vmatprep.mubr.f32.mxu0 0.0
        %1159 = vmatmul.mubr.f32.gmra.mrb[0].mxu0 %v890
        %v1160 = vpop.f32.mrb[0].mxu0
        %v1161 = vadd.f32 0.0, %v1160
        %v1162 = vpop.f32.mrb[0].mxu0
        %v1163 = vadd.f32 0.0, %v1162
        %1164 = vmatprep.mubr.f32.mxu0 0.0
        %1165 = vmatmul.mubr.f32.gmra.mrb[0].mxu0 %v893
        %v1166 = vpop.f32.mrb[0].mxu0
        %v1167 = vadd.f32 0.0, %v1166
        %v1168 = vpop.f32.mrb[0].mxu0
        %v1169 = vadd.f32 0.0, %v1168
        %1170 = vmatprep.mubr.f32.mxu0 0.0
        %1171 = vmatmul.mubr.f32.gmra.mrb[0].mxu0 %v896
        %v1172 = vpop.f32.mrb[0].mxu0
        %v1173 = vadd.f32 0.0, %v1172
        %v1174 = vpop.f32.mrb[0].mxu0
        %v1175 = vadd.f32 0.0, %v1174
        %1176 = vmatprep.mubr.f32.mxu0 0.0
        %1177 = vmatmul.mubr.f32.gmra.mrb[0].mxu0 %v899
        %v1178 = vpop.f32.mrb[0].mxu0
        %v1179 = vadd.f32 0.0, %v1178
        %v1180 = vpop.f32.mrb[0].mxu0
        %v1181 = vadd.f32 0.0, %v1180
        %1182 = vmatprep.mubr.f32.mxu0 0.0
        %1183 = vmatmul.mubr.f32.gmra.mrb[0].mxu0 %v902
        %v1184 = vpop.f32.mrb[0].mxu0
        %v1185 = vadd.f32 0.0, %v1184
        %v1186 = vpop.f32.mrb[0].mxu0
        %v1187 = vadd.f32 0.0, %v1186
        %1188 = vmatprep.mubr.f32.mxu0 0.0
        %1189 = vmatmul.mubr.f32.gmra.mrb[0].mxu0 %v905
        %v1190 = vpop.f32.mrb[0].mxu0
        %v1191 = vadd.f32 0.0, %v1190
        %v1192 = vpop.f32.mrb[0].mxu0
        %v1193 = vadd.f32 0.0, %v1192
        %1194 = vmatprep.mubr.f32.mxu0 0.0
        %1195 = vmatmul.mubr.f32.gmra.mrb[0].mxu0 %v908
        %v1196 = vpop.f32.mrb[0].mxu0
        %v1197 = vadd.f32 0.0, %v1196
        %v1198 = vpop.f32.mrb[0].mxu0
        %v1199 = vadd.f32 0.0, %v1198
        %1200 = vmatprep.mubr.f32.mxu0 0.0
        %1201 = vmatmul.mubr.f32.gmra.mrb[0].mxu0 %v911
        %v1202 = vpop.f32.mrb[0].mxu0
        %v1203 = vadd.f32 0.0, %v1202
        %v1204 = vpop.f32.mrb[0].mxu0
        %v1205 = vadd.f32 0.0, %v1204
        %1206 = vmatprep.mubr.f32.mxu0 0.0
        %1207 = vmatmul.mubr.f32.gmra.mrb[0].mxu0 %v914
        %v1208 = vpop.f32.mrb[0].mxu0
        %v1209 = vadd.f32 0.0, %v1208
        %v1210 = vpop.f32.mrb[0].mxu0
        %v1211 = vadd.f32 0.0, %v1210
        %1212 = vmatprep.mubr.f32.mxu0 0.0
        %1213 = vmatmul.mubr.f32.gmra.mrb[0].mxu0 %v917
        %v1214 = vpop.f32.mrb[0].mxu0
        %v1215 = vadd.f32 0.0, %v1214
        %v1216 = vpop.f32.mrb[0].mxu0
        %v1217 = vadd.f32 0.0, %v1216
        %1218 = vmatprep.mubr.f32.mxu0 0.0
        %1219 = vmatmul.mubr.f32.gmra.mrb[0].mxu0 %v920
        %v1220 = vpop.f32.mrb[0].mxu0
        %v1221 = vadd.f32 0.0, %v1220
        %v1222 = vpop.f32.mrb[0].mxu0
        %v1223 = vadd.f32 0.0, %v1222
        %1224 = vmatprep.mubr.f32.mxu0 0.0
        %1225 = vmatmul.mubr.f32.gmra.mrb[0].mxu0 %v923
        %v1226 = vpop.f32.mrb[0].mxu0
        %v1227 = vadd.f32 0.0, %v1226
        %v1228 = vpop.f32.mrb[0].mxu0
        %v1229 = vadd.f32 0.0, %v1228
        %1230 = vmatprep.mubr.f32.mxu0 0.0
        %1231 = vmatmul.mubr.f32.gmra.mrb[0].mxu0 %v926
        %v1232 = vpop.f32.mrb[0].mxu0
        %v1233 = vadd.f32 0.0, %v1232
        %v1234 = vpop.f32.mrb[0].mxu0
        %v1235 = vadd.f32 0.0, %v1234
        %1236 = vmatprep.mubr.f32.mxu0 0.0
        %1237 = vmatmul.mubr.f32.gmra.mrb[0].mxu0 %v929
        %v1238 = vpop.f32.mrb[0].mxu0
        %v1239 = vadd.f32 0.0, %v1238
        %v1240 = vpop.f32.mrb[0].mxu0
        %v1241 = vadd.f32 0.0, %v1240
        %1242 = vmatprep.mubr.f32.mxu0 0.0
        %1243 = vmatmul.mubr.f32.gmra.mrb[0].mxu0 %v932
        %v1244 = vpop.f32.mrb[0].mxu0
        %v1245 = vadd.f32 0.0, %v1244
        %v1246 = vpop.f32.mrb[0].mxu0
        %v1247 = vadd.f32 0.0, %v1246
        %1248 = vmatprep.mubr.f32.mxu0 0.0
        %1249 = vmatmul.mubr.f32.gmra.mrb[0].mxu0 %v935
        %v1250 = vpop.f32.mrb[0].mxu0
        %v1251 = vadd.f32 0.0, %v1250
        %v1252 = vpop.f32.mrb[0].mxu0
        %v1253 = vadd.f32 0.0, %v1252
        %1254 = vmatprep.mubr.f32.mxu0 0.0
        %1255 = vmatmul.mubr.f32.gmra.mrb[0].mxu0 %v938
        %v1256 = vpop.f32.mrb[0].mxu0
        %v1257 = vadd.f32 0.0, %v1256
        %v1258 = vpop.f32.mrb[0].mxu0
        %v1259 = vadd.f32 0.0, %v1258
        %1260 = vdwg.mxu0
        %v1261 = vmax.f32 %v1071, %v1073
        %1262 = vmax.xlane.f32.xlu0 %v1261
        %v1263 = vpop.xlane.xlu0 %1262
        %v1264 = vmax.f32 %v1077, %v1079
        %1265 = vmax.xlane.f32.xlu0 %v1264
        %v1266 = vpop.xlane.xlu0 %1265
        %v1267 = vmax.f32 %v1083, %v1085
        %1268 = vmax.xlane.f32.xlu0 %v1267
        %v1269 = vpop.xlane.xlu0 %1268
        %v1270 = vmax.f32 %v1089, %v1091
        %1271 = vmax.xlane.f32.xlu0 %v1270
        %v1272 = vpop.xlane.xlu0 %1271
        %v1273 = vmax.f32 %v1095, %v1097
        %1274 = vmax.xlane.f32.xlu0 %v1273
        %v1275 = vpop.xlane.xlu0 %1274
        %v1276 = vmax.f32 %v1101, %v1103
        %1277 = vmax.xlane.f32.xlu0 %v1276
        %v1278 = vpop.xlane.xlu0 %1277
        %v1279 = vmax.f32 %v1107, %v1109
        %1280 = vmax.xlane.f32.xlu0 %v1279
        %v1281 = vpop.xlane.xlu0 %1280
        %v1282 = vmax.f32 %v1113, %v1115
        %1283 = vmax.xlane.f32.xlu0 %v1282
        %v1284 = vpop.xlane.xlu0 %1283
        %v1285 = vmax.f32 %v1119, %v1121
        %1286 = vmax.xlane.f32.xlu0 %v1285
        %v1287 = vpop.xlane.xlu0 %1286
        %v1288 = vmax.f32 %v1125, %v1127
        %1289 = vmax.xlane.f32.xlu0 %v1288
        %v1290 = vpop.xlane.xlu0 %1289
        %v1291 = vmax.f32 %v1131, %v1133
        %1292 = vmax.xlane.f32.xlu0 %v1291
        %v1293 = vpop.xlane.xlu0 %1292
        %v1294 = vmax.f32 %v1137, %v1139
        %1295 = vmax.xlane.f32.xlu0 %v1294
        %v1296 = vpop.xlane.xlu0 %1295
        %v1297 = vmax.f32 %v1143, %v1145
        %1298 = vmax.xlane.f32.xlu0 %v1297
        %v1299 = vpop.xlane.xlu0 %1298
        %v1300 = vmax.f32 %v1149, %v1151
        %1301 = vmax.xlane.f32.xlu0 %v1300
        %v1302 = vpop.xlane.xlu0 %1301
        %v1303 = vmax.f32 %v1155, %v1157
        %1304 = vmax.xlane.f32.xlu0 %v1303
        %v1305 = vpop.xlane.xlu0 %1304
        %v1306 = vmax.f32 %v1161, %v1163
        %1307 = vmax.xlane.f32.xlu0 %v1306
        %v1308 = vpop.xlane.xlu0 %1307
        %v1309 = vmax.f32 %v1167, %v1169
        %1310 = vmax.xlane.f32.xlu0 %v1309
        %v1311 = vpop.xlane.xlu0 %1310
        %v1312 = vmax.f32 %v1173, %v1175
        %1313 = vmax.xlane.f32.xlu0 %v1312
        %v1314 = vpop.xlane.xlu0 %1313
        %v1315 = vmax.f32 %v1179, %v1181
        %1316 = vmax.xlane.f32.xlu0 %v1315
        %v1317 = vpop.xlane.xlu0 %1316
        %v1318 = vmax.f32 %v1185, %v1187
        %1319 = vmax.xlane.f32.xlu0 %v1318
        %v1320 = vpop.xlane.xlu0 %1319
        %v1321 = vmax.f32 %v1191, %v1193
        %1322 = vmax.xlane.f32.xlu0 %v1321
        %v1323 = vpop.xlane.xlu0 %1322
        %v1324 = vmax.f32 %v1197, %v1199
        %1325 = vmax.xlane.f32.xlu0 %v1324
        %v1326 = vpop.xlane.xlu0 %1325
        %v1327 = vmax.f32 %v1203, %v1205
        %1328 = vmax.xlane.f32.xlu0 %v1327
        %v1329 = vpop.xlane.xlu0 %1328
        %v1330 = vmax.f32 %v1209, %v1211
        %1331 = vmax.xlane.f32.xlu0 %v1330
        %v1332 = vpop.xlane.xlu0 %1331
        %v1333 = vmax.f32 %v1215, %v1217
        %1334 = vmax.xlane.f32.xlu0 %v1333
        %v1335 = vpop.xlane.xlu0 %1334
        %v1336 = vmax.f32 %v1221, %v1223
        %1337 = vmax.xlane.f32.xlu0 %v1336
        %v1338 = vpop.xlane.xlu0 %1337
        %v1339 = vmax.f32 %v1227, %v1229
        %1340 = vmax.xlane.f32.xlu0 %v1339
        %v1341 = vpop.xlane.xlu0 %1340
        %v1342 = vmax.f32 %v1233, %v1235
        %1343 = vmax.xlane.f32.xlu0 %v1342
        %v1344 = vpop.xlane.xlu0 %1343
        %v1345 = vmax.f32 %v1239, %v1241
        %1346 = vmax.xlane.f32.xlu0 %v1345
        %v1347 = vpop.xlane.xlu0 %1346
        %v1348 = vmax.f32 %v1245, %v1247
        %1349 = vmax.xlane.f32.xlu0 %v1348
        %v1350 = vpop.xlane.xlu0 %1349
        %v1351 = vmax.f32 %v1251, %v1253
        %1352 = vmax.xlane.f32.xlu0 %v1351
        %v1353 = vpop.xlane.xlu0 %1352
        %v1354 = vmax.f32 %v1257, %v1259
        %1355 = vmax.xlane.f32.xlu0 %v1354
        %v1356 = vpop.xlane.xlu0 %1355
        %v1357 = vsub.f32 %v1071, %v1263
        %v1358 = vsub.f32 %v1073, %v1263
        %v1359 = vsub.f32 %v1077, %v1266
        %v1360 = vsub.f32 %v1079, %v1266
        %v1361 = vsub.f32 %v1083, %v1269
        %v1362 = vsub.f32 %v1085, %v1269
        %v1363 = vsub.f32 %v1089, %v1272
        %v1364 = vsub.f32 %v1091, %v1272
        %v1365 = vsub.f32 %v1095, %v1275
        %v1366 = vsub.f32 %v1097, %v1275
        %v1367 = vsub.f32 %v1101, %v1278
        %v1368 = vsub.f32 %v1103, %v1278
        %v1369 = vsub.f32 %v1107, %v1281
        %v1370 = vsub.f32 %v1109, %v1281
        %v1371 = vsub.f32 %v1113, %v1284
        %v1372 = vsub.f32 %v1115, %v1284
        %v1373 = vsub.f32 %v1119, %v1287
        %v1374 = vsub.f32 %v1121, %v1287
        %v1375 = vsub.f32 %v1125, %v1290
        %v1376 = vsub.f32 %v1127, %v1290
        %v1377 = vsub.f32 %v1131, %v1293
        %v1378 = vsub.f32 %v1133, %v1293
        %v1379 = vsub.f32 %v1137, %v1296
        %v1380 = vsub.f32 %v1139, %v1296
        %v1381 = vsub.f32 %v1143, %v1299
        %v1382 = vsub.f32 %v1145, %v1299
        %v1383 = vsub.f32 %v1149, %v1302
        %v1384 = vsub.f32 %v1151, %v1302
        %v1385 = vsub.f32 %v1155, %v1305
        %v1386 = vsub.f32 %v1157, %v1305
        %v1387 = vsub.f32 %v1161, %v1308
        %v1388 = vsub.f32 %v1163, %v1308
        %v1389 = vsub.f32 %v1167, %v1311
        %v1390 = vsub.f32 %v1169, %v1311
        %v1391 = vsub.f32 %v1173, %v1314
        %v1392 = vsub.f32 %v1175, %v1314
        %v1393 = vsub.f32 %v1179, %v1317
        %v1394 = vsub.f32 %v1181, %v1317
        %v1395 = vsub.f32 %v1185, %v1320
        %v1396 = vsub.f32 %v1187, %v1320
        %v1397 = vsub.f32 %v1191, %v1323
        %v1398 = vsub.f32 %v1193, %v1323
        %v1399 = vsub.f32 %v1197, %v1326
        %v1400 = vsub.f32 %v1199, %v1326
        %v1401 = vsub.f32 %v1203, %v1329
        %v1402 = vsub.f32 %v1205, %v1329
        %v1403 = vsub.f32 %v1209, %v1332
        %v1404 = vsub.f32 %v1211, %v1332
        %v1405 = vsub.f32 %v1215, %v1335
        %v1406 = vsub.f32 %v1217, %v1335
        %v1407 = vsub.f32 %v1221, %v1338
        %v1408 = vsub.f32 %v1223, %v1338
        %v1409 = vsub.f32 %v1227, %v1341
        %v1410 = vsub.f32 %v1229, %v1341
        %v1411 = vsub.f32 %v1233, %v1344
        %v1412 = vsub.f32 %v1235, %v1344
        %v1413 = vsub.f32 %v1239, %v1347
        %v1414 = vsub.f32 %v1241, %v1347
        %v1415 = vsub.f32 %v1245, %v1350
        %v1416 = vsub.f32 %v1247, %v1350
        %v1417 = vsub.f32 %v1251, %v1353
        %v1418 = vsub.f32 %v1253, %v1353
        %v1419 = vsub.f32 %v1257, %v1356
        %v1420 = vsub.f32 %v1259, %v1356
        %v1421 = vmul.f32 %v1357, 1.442695
        %v1422 = vpow.pop %v1421
        %v1423 = vmul.f32 %v1358, 1.442695
        %v1424 = vpow.pop %v1423
        %v1425 = vmul.f32 %v1359, 1.442695
        %v1426 = vpow.pop %v1425
        %v1427 = vmul.f32 %v1360, 1.442695
        %v1428 = vpow.pop %v1427
        %v1429 = vmul.f32 %v1361, 1.442695
        %v1430 = vpow.pop %v1429
        %v1431 = vmul.f32 %v1362, 1.442695
        %v1432 = vpow.pop %v1431
        %v1433 = vmul.f32 %v1363, 1.442695
        %v1434 = vpow.pop %v1433
        %v1435 = vmul.f32 %v1364, 1.442695
        %v1436 = vpow.pop %v1435
        %v1437 = vmul.f32 %v1365, 1.442695
        %v1438 = vpow.pop %v1437
        %v1439 = vmul.f32 %v1366, 1.442695
        %v1440 = vpow.pop %v1439
        %v1441 = vmul.f32 %v1367, 1.442695
        %v1442 = vpow.pop %v1441
        %v1443 = vmul.f32 %v1368, 1.442695
        %v1444 = vpow.pop %v1443
        %v1445 = vmul.f32 %v1369, 1.442695
        %v1446 = vpow.pop %v1445
        %v1447 = vmul.f32 %v1370, 1.442695
        %v1448 = vpow.pop %v1447
        %v1449 = vmul.f32 %v1371, 1.442695
        %v1450 = vpow.pop %v1449
        %v1451 = vmul.f32 %v1372, 1.442695
        %v1452 = vpow.pop %v1451
        %v1453 = vmul.f32 %v1373, 1.442695
        %v1454 = vpow.pop %v1453
        %v1455 = vmul.f32 %v1374, 1.442695
        %v1456 = vpow.pop %v1455
        %v1457 = vmul.f32 %v1375, 1.442695
        %v1458 = vpow.pop %v1457
        %v1459 = vmul.f32 %v1376, 1.442695
        %v1460 = vpow.pop %v1459
        %v1461 = vmul.f32 %v1377, 1.442695
        %v1462 = vpow.pop %v1461
        %v1463 = vmul.f32 %v1378, 1.442695
        %v1464 = vpow.pop %v1463
        %v1465 = vmul.f32 %v1379, 1.442695
        %v1466 = vpow.pop %v1465
        %v1467 = vmul.f32 %v1380, 1.442695
        %v1468 = vpow.pop %v1467
        %v1469 = vmul.f32 %v1381, 1.442695
        %v1470 = vpow.pop %v1469
        %v1471 = vmul.f32 %v1382, 1.442695
        %v1472 = vpow.pop %v1471
        %v1473 = vmul.f32 %v1383, 1.442695
        %v1474 = vpow.pop %v1473
        %v1475 = vmul.f32 %v1384, 1.442695
        %v1476 = vpow.pop %v1475
        %v1477 = vmul.f32 %v1385, 1.442695
        %v1478 = vpow.pop %v1477
        %v1479 = vmul.f32 %v1386, 1.442695
        %v1480 = vpow.pop %v1479
        %v1481 = vmul.f32 %v1387, 1.442695
        %v1482 = vpow.pop %v1481
        %v1483 = vmul.f32 %v1388, 1.442695
        %v1484 = vpow.pop %v1483
        %v1485 = vmul.f32 %v1389, 1.442695
        %v1486 = vpow.pop %v1485
        %v1487 = vmul.f32 %v1390, 1.442695
        %v1488 = vpow.pop %v1487
        %v1489 = vmul.f32 %v1391, 1.442695
        %v1490 = vpow.pop %v1489
        %v1491 = vmul.f32 %v1392, 1.442695
        %v1492 = vpow.pop %v1491
        %v1493 = vmul.f32 %v1393, 1.442695
        %v1494 = vpow.pop %v1493
        %v1495 = vmul.f32 %v1394, 1.442695
        %v1496 = vpow.pop %v1495
        %v1497 = vmul.f32 %v1395, 1.442695
        %v1498 = vpow.pop %v1497
        %v1499 = vmul.f32 %v1396, 1.442695
        %v1500 = vpow.pop %v1499
        %v1501 = vmul.f32 %v1397, 1.442695
        %v1502 = vpow.pop %v1501
        %v1503 = vmul.f32 %v1398, 1.442695
        %v1504 = vpow.pop %v1503
        %v1505 = vmul.f32 %v1399, 1.442695
        %v1506 = vpow.pop %v1505
        %v1507 = vmul.f32 %v1400, 1.442695
        %v1508 = vpow.pop %v1507
        %v1509 = vmul.f32 %v1401, 1.442695
        %v1510 = vpow.pop %v1509
        %v1511 = vmul.f32 %v1402, 1.442695
        %v1512 = vpow.pop %v1511
        %v1513 = vmul.f32 %v1403, 1.442695
        %v1514 = vpow.pop %v1513
        %v1515 = vmul.f32 %v1404, 1.442695
        %v1516 = vpow.pop %v1515
        %v1517 = vmul.f32 %v1405, 1.442695
        %v1518 = vpow.pop %v1517
        %v1519 = vmul.f32 %v1406, 1.442695
        %v1520 = vpow.pop %v1519
        %v1521 = vmul.f32 %v1407, 1.442695
        %v1522 = vpow.pop %v1521
        %v1523 = vmul.f32 %v1408, 1.442695
        %v1524 = vpow.pop %v1523
        %v1525 = vmul.f32 %v1409, 1.442695
        %v1526 = vpow.pop %v1525
        %v1527 = vmul.f32 %v1410, 1.442695
        %v1528 = vpow.pop %v1527
        %v1529 = vmul.f32 %v1411, 1.442695
        %v1530 = vpow.pop %v1529
        %v1531 = vmul.f32 %v1412, 1.442695
        %v1532 = vpow.pop %v1531
        %v1533 = vmul.f32 %v1413, 1.442695
        %v1534 = vpow.pop %v1533
        %v1535 = vmul.f32 %v1414, 1.442695
        %v1536 = vpow.pop %v1535
        %v1537 = vmul.f32 %v1415, 1.442695
        %v1538 = vpow.pop %v1537
        %v1539 = vmul.f32 %v1416, 1.442695
        %v1540 = vpow.pop %v1539
        %v1541 = vmul.f32 %v1417, 1.442695
        %v1542 = vpow.pop %v1541
        %v1543 = vmul.f32 %v1418, 1.442695
        %v1544 = vpow.pop %v1543
        %v1545 = vmul.f32 %v1419, 1.442695
        %v1546 = vpow.pop %v1545
        %v1547 = vmul.f32 %v1420, 1.442695
        %v1548 = vpow.pop %v1547
        %v1549 = vadd.f32 %v1422, %v1424
        %1550 = vadd.xlane.f32.xlu0 %v1549
        %v1551 = vpop.xlane.xlu0 %1550
        %v1552 = vadd.f32 %v1426, %v1428
        %1553 = vadd.xlane.f32.xlu0 %v1552
        %v1554 = vpop.xlane.xlu0 %1553
        %v1555 = vadd.f32 %v1430, %v1432
        %1556 = vadd.xlane.f32.xlu0 %v1555
        %v1557 = vpop.xlane.xlu0 %1556
        %v1558 = vadd.f32 %v1434, %v1436
        %1559 = vadd.xlane.f32.xlu0 %v1558
        %v1560 = vpop.xlane.xlu0 %1559
        %v1561 = vadd.f32 %v1438, %v1440
        %1562 = vadd.xlane.f32.xlu0 %v1561
        %v1563 = vpop.xlane.xlu0 %1562
        %v1564 = vadd.f32 %v1442, %v1444
        %1565 = vadd.xlane.f32.xlu0 %v1564
        %v1566 = vpop.xlane.xlu0 %1565
        %v1567 = vadd.f32 %v1446, %v1448
        %1568 = vadd.xlane.f32.xlu0 %v1567
        %v1569 = vpop.xlane.xlu0 %1568
        %v1570 = vadd.f32 %v1450, %v1452
        %1571 = vadd.xlane.f32.xlu0 %v1570
        %v1572 = vpop.xlane.xlu0 %1571
        %v1573 = vadd.f32 %v1454, %v1456
        %1574 = vadd.xlane.f32.xlu0 %v1573
        %v1575 = vpop.xlane.xlu0 %1574
        %v1576 = vadd.f32 %v1458, %v1460
        %1577 = vadd.xlane.f32.xlu0 %v1576
        %v1578 = vpop.xlane.xlu0 %1577
        %v1579 = vadd.f32 %v1462, %v1464
        %1580 = vadd.xlane.f32.xlu0 %v1579
        %v1581 = vpop.xlane.xlu0 %1580
        %v1582 = vadd.f32 %v1466, %v1468
        %1583 = vadd.xlane.f32.xlu0 %v1582
        %v1584 = vpop.xlane.xlu0 %1583
        %v1585 = vadd.f32 %v1470, %v1472
        %1586 = vadd.xlane.f32.xlu0 %v1585
        %v1587 = vpop.xlane.xlu0 %1586
        %v1588 = vadd.f32 %v1474, %v1476
        %1589 = vadd.xlane.f32.xlu0 %v1588
        %v1590 = vpop.xlane.xlu0 %1589
        %v1591 = vadd.f32 %v1478, %v1480
        %1592 = vadd.xlane.f32.xlu0 %v1591
        %v1593 = vpop.xlane.xlu0 %1592
        %v1594 = vadd.f32 %v1482, %v1484
        %1595 = vadd.xlane.f32.xlu0 %v1594
        %v1596 = vpop.xlane.xlu0 %1595
        %v1597 = vadd.f32 %v1486, %v1488
        %1598 = vadd.xlane.f32.xlu0 %v1597
        %v1599 = vpop.xlane.xlu0 %1598
        %v1600 = vadd.f32 %v1490, %v1492
        %1601 = vadd.xlane.f32.xlu0 %v1600
        %v1602 = vpop.xlane.xlu0 %1601
        %v1603 = vadd.f32 %v1494, %v1496
        %1604 = vadd.xlane.f32.xlu0 %v1603
        %v1605 = vpop.xlane.xlu0 %1604
        %v1606 = vadd.f32 %v1498, %v1500
        %1607 = vadd.xlane.f32.xlu0 %v1606
        %v1608 = vpop.xlane.xlu0 %1607
        %v1609 = vadd.f32 %v1502, %v1504
        %1610 = vadd.xlane.f32.xlu0 %v1609
        %v1611 = vpop.xlane.xlu0 %1610
        %v1612 = vadd.f32 %v1506, %v1508
        %1613 = vadd.xlane.f32.xlu0 %v1612
        %v1614 = vpop.xlane.xlu0 %1613
        %v1615 = vadd.f32 %v1510, %v1512
        %1616 = vadd.xlane.f32.xlu0 %v1615
        %v1617 = vpop.xlane.xlu0 %1616
        %v1618 = vadd.f32 %v1514, %v1516
        %1619 = vadd.xlane.f32.xlu0 %v1618
        %v1620 = vpop.xlane.xlu0 %1619
        %v1621 = vadd.f32 %v1518, %v1520
        %1622 = vadd.xlane.f32.xlu0 %v1621
        %v1623 = vpop.xlane.xlu0 %1622
        %v1624 = vadd.f32 %v1522, %v1524
        %1625 = vadd.xlane.f32.xlu0 %v1624
        %v1626 = vpop.xlane.xlu0 %1625
        %v1627 = vadd.f32 %v1526, %v1528
        %1628 = vadd.xlane.f32.xlu0 %v1627
        %v1629 = vpop.xlane.xlu0 %1628
        %v1630 = vadd.f32 %v1530, %v1532
        %1631 = vadd.xlane.f32.xlu0 %v1630
        %v1632 = vpop.xlane.xlu0 %1631
        %v1633 = vadd.f32 %v1534, %v1536
        %1634 = vadd.xlane.f32.xlu0 %v1633
        %v1635 = vpop.xlane.xlu0 %1634
        %v1636 = vadd.f32 %v1538, %v1540
        %1637 = vadd.xlane.f32.xlu0 %v1636
        %v1638 = vpop.xlane.xlu0 %1637
        %v1639 = vadd.f32 %v1542, %v1544
        %1640 = vadd.xlane.f32.xlu0 %v1639
        %v1641 = vpop.xlane.xlu0 %1640
        %v1642 = vadd.f32 %v1546, %v1548
        %1643 = vadd.xlane.f32.xlu0 %v1642
        %v1644 = vpop.xlane.xlu0 %1643
        %v1645 = vrcp.pop %v1551
        %v1646 = vrcp.pop %v1554
        %v1647 = vrcp.pop %v1557
        %v1648 = vrcp.pop %v1560
        %v1649 = vrcp.pop %v1563
        %v1650 = vrcp.pop %v1566
        %v1651 = vrcp.pop %v1569
        %v1652 = vrcp.pop %v1572
        %v1653 = vrcp.pop %v1575
        %v1654 = vrcp.pop %v1578
        %v1655 = vrcp.pop %v1581
        %v1656 = vrcp.pop %v1584
        %v1657 = vrcp.pop %v1587
        %v1658 = vrcp.pop %v1590
        %v1659 = vrcp.pop %v1593
        %v1660 = vrcp.pop %v1596
        %v1661 = vrcp.pop %v1599
        %v1662 = vrcp.pop %v1602
        %v1663 = vrcp.pop %v1605
        %v1664 = vrcp.pop %v1608
        %v1665 = vrcp.pop %v1611
        %v1666 = vrcp.pop %v1614
        %v1667 = vrcp.pop %v1617
        %v1668 = vrcp.pop %v1620
        %v1669 = vrcp.pop %v1623
        %v1670 = vrcp.pop %v1626
        %v1671 = vrcp.pop %v1629
        %v1672 = vrcp.pop %v1632
        %v1673 = vrcp.pop %v1635
        %v1674 = vrcp.pop %v1638
        %v1675 = vrcp.pop %v1641
        %v1676 = vrcp.pop %v1644
        %v1677 = vmul.f32 %v1422, %v1645
        %v1678 = vmul.f32 %v1424, %v1645
        %v1679 = vmul.f32 %v1426, %v1646
        %v1680 = vmul.f32 %v1428, %v1646
        %v1681 = vmul.f32 %v1430, %v1647
        %v1682 = vmul.f32 %v1432, %v1647
        %v1683 = vmul.f32 %v1434, %v1648
        %v1684 = vmul.f32 %v1436, %v1648
        %v1685 = vmul.f32 %v1438, %v1649
        %v1686 = vmul.f32 %v1440, %v1649
        %v1687 = vmul.f32 %v1442, %v1650
        %v1688 = vmul.f32 %v1444, %v1650
        %v1689 = vmul.f32 %v1446, %v1651
        %v1690 = vmul.f32 %v1448, %v1651
        %v1691 = vmul.f32 %v1450, %v1652
        %v1692 = vmul.f32 %v1452, %v1652
        %v1693 = vmul.f32 %v1454, %v1653
        %v1694 = vmul.f32 %v1456, %v1653
        %v1695 = vmul.f32 %v1458, %v1654
        %v1696 = vmul.f32 %v1460, %v1654
        %v1697 = vmul.f32 %v1462, %v1655
        %v1698 = vmul.f32 %v1464, %v1655
        %v1699 = vmul.f32 %v1466, %v1656
        %v1700 = vmul.f32 %v1468, %v1656
        %v1701 = vmul.f32 %v1470, %v1657
        %v1702 = vmul.f32 %v1472, %v1657
        %v1703 = vmul.f32 %v1474, %v1658
        %v1704 = vmul.f32 %v1476, %v1658
        %v1705 = vmul.f32 %v1478, %v1659
        %v1706 = vmul.f32 %v1480, %v1659
        %v1707 = vmul.f32 %v1482, %v1660
        %v1708 = vmul.f32 %v1484, %v1660
        %v1709 = vmul.f32 %v1486, %v1661
        %v1710 = vmul.f32 %v1488, %v1661
        %v1711 = vmul.f32 %v1490, %v1662
        %v1712 = vmul.f32 %v1492, %v1662
        %v1713 = vmul.f32 %v1494, %v1663
        %v1714 = vmul.f32 %v1496, %v1663
        %v1715 = vmul.f32 %v1498, %v1664
        %v1716 = vmul.f32 %v1500, %v1664
        %v1717 = vmul.f32 %v1502, %v1665
        %v1718 = vmul.f32 %v1504, %v1665
        %v1719 = vmul.f32 %v1506, %v1666
        %v1720 = vmul.f32 %v1508, %v1666
        %v1721 = vmul.f32 %v1510, %v1667
        %v1722 = vmul.f32 %v1512, %v1667
        %v1723 = vmul.f32 %v1514, %v1668
        %v1724 = vmul.f32 %v1516, %v1668
        %v1725 = vmul.f32 %v1518, %v1669
        %v1726 = vmul.f32 %v1520, %v1669
        %v1727 = vmul.f32 %v1522, %v1670
        %v1728 = vmul.f32 %v1524, %v1670
        %v1729 = vmul.f32 %v1526, %v1671
        %v1730 = vmul.f32 %v1528, %v1671
        %v1731 = vmul.f32 %v1530, %v1672
        %v1732 = vmul.f32 %v1532, %v1672
        %v1733 = vmul.f32 %v1534, %v1673
        %v1734 = vmul.f32 %v1536, %v1673
        %v1735 = vmul.f32 %v1538, %v1674
        %v1736 = vmul.f32 %v1540, %v1674
        %v1737 = vmul.f32 %v1542, %v1675
        %v1738 = vmul.f32 %v1544, %v1675
        %v1739 = vmul.f32 %v1546, %v1676
        %v1740 = vmul.f32 %v1548, %v1676
        %1741 = vmatprep.subr.mxu0 %v1678
        %1742 = vmatpush1.xpose.msra.mxu0 %v1677
        %1743 = vmatprep.subr.mxu0 %v1680
        %1744 = vmatpush1.xpose.msra.mxu0 %v1679
        %1745 = vmatprep.subr.mxu0 %v1682
        %1746 = vmatpush1.xpose.msra.mxu0 %v1681
        %1747 = vmatprep.subr.mxu0 %v1684
        %1748 = vmatpush1.xpose.msra.mxu0 %v1683
        %1749 = vmatprep.subr.mxu0 %v1686
        %1750 = vmatpush1.xpose.msra.mxu0 %v1685
        %1751 = vmatprep.subr.mxu0 %v1688
        %1752 = vmatpush1.xpose.msra.mxu0 %v1687
        %1753 = vmatprep.subr.mxu0 %v1690
        %1754 = vmatpush1.xpose.msra.mxu0 %v1689
        %1755 = vmatprep.subr.mxu0 %v1692
        %1756 = vmatpush1.xpose.msra.mxu0 %v1691
        %1757 = vmatprep.subr.mxu0 %v1694
        %1758 = vmatpush1.xpose.msra.mxu0 %v1693
        %1759 = vmatprep.subr.mxu0 %v1696
        %1760 = vmatpush1.xpose.msra.mxu0 %v1695
        %1761 = vmatprep.subr.mxu0 %v1698
        %1762 = vmatpush1.xpose.msra.mxu0 %v1697
        %1763 = vmatprep.subr.mxu0 %v1700
        %1764 = vmatpush1.xpose.msra.mxu0 %v1699
        %1765 = vmatprep.subr.mxu0 %v1702
        %1766 = vmatpush1.xpose.msra.mxu0 %v1701
        %1767 = vmatprep.subr.mxu0 %v1704
        %1768 = vmatpush1.xpose.msra.mxu0 %v1703
        %1769 = vmatprep.subr.mxu0 %v1706
        %1770 = vmatpush1.xpose.msra.mxu0 %v1705
        %1771 = vmatprep.subr.mxu0 %v1708
        %1772 = vmatpush1.xpose.msra.mxu0 %v1707
        %1773 = vmatprep.subr.mxu0 %v1710
        %1774 = vmatpush1.xpose.msra.mxu0 %v1709
        %1775 = vmatprep.subr.mxu0 %v1712
        %1776 = vmatpush1.xpose.msra.mxu0 %v1711
        %1777 = vmatprep.subr.mxu0 %v1714
        %1778 = vmatpush1.xpose.msra.mxu0 %v1713
        %1779 = vmatprep.subr.mxu0 %v1716
        %1780 = vmatpush1.xpose.msra.mxu0 %v1715
        %1781 = vmatprep.subr.mxu0 %v1718
        %1782 = vmatpush1.xpose.msra.mxu0 %v1717
        %1783 = vmatprep.subr.mxu0 %v1720
        %1784 = vmatpush1.xpose.msra.mxu0 %v1719
        %1785 = vmatprep.subr.mxu0 %v1722
        %1786 = vmatpush1.xpose.msra.mxu0 %v1721
        %1787 = vmatprep.subr.mxu0 %v1724
        %1788 = vmatpush1.xpose.msra.mxu0 %v1723
        %1789 = vmatprep.subr.mxu0 %v1726
        %1790 = vmatpush1.xpose.msra.mxu0 %v1725
        %1791 = vmatprep.subr.mxu0 %v1728
        %1792 = vmatpush1.xpose.msra.mxu0 %v1727
        %1793 = vmatprep.subr.mxu0 %v1730
        %1794 = vmatpush1.xpose.msra.mxu0 %v1729
        %1795 = vmatprep.subr.mxu0 %v1732
        %1796 = vmatpush1.xpose.msra.mxu0 %v1731
        %1797 = vmatprep.subr.mxu0 %v1734
        %1798 = vmatpush1.xpose.msra.mxu0 %v1733
        %1799 = vmatprep.subr.mxu0 %v1736
        %1800 = vmatpush1.xpose.msra.mxu0 %v1735
        %1801 = vmatprep.subr.mxu0 %v1738
        %1802 = vmatpush1.xpose.msra.mxu0 %v1737
        %1803 = vmatprep.subr.mxu0 %v1740
        %1804 = vmatpush1.xpose.msra.mxu0 %v1739
        %1805 = vmatprep.mubr.f32.mxu0 %v713
        %1806 = vmatmul.mubr.f32.gmra.mrb[0].mxu0 %v711
        %v1807 = vpop.f32.mrb[0].mxu0
        %v1808 = vadd.f32 0.0, %v1807
        %v1809 = vpop.f32.mrb[0].mxu0
        %v1810 = vadd.f32 0.0, %v1809
        %1811 = vdwg.mxu0
        %1812 = vst [vmem:[%s259] sm:$0xf] %v1808
        %1813 = vst [vmem:[%s259 + $0x8] sm:$0xf] %v1810
        %1814 = vrot.lane.b32.xlu0 %v715, 124
        %v1815 = vpop.permute.xlu0 %1814
        %1816 = vrot.lane.b32.xlu0 %v716, 124
        %v1817 = vpop.permute.xlu0 %1816
        %1818 = vrot.lane.b32.xlu0 %v717, 124
        %v1819 = vpop.permute.xlu0 %1818
        %1820 = vrot.lane.b32.xlu0 %v718, 124
        %v1821 = vpop.permute.xlu0 %1820
        %1822 = vrot.lane.b32.xlu0 %v719, 124
        %v1823 = vpop.permute.xlu0 %1822
        %1824 = vrot.lane.b32.xlu0 %v720, 124
        %v1825 = vpop.permute.xlu0 %1824
        %1826 = vrot.lane.b32.xlu0 %v721, 124
        %v1827 = vpop.permute.xlu0 %1826
        %1828 = vrot.lane.b32.xlu0 %v722, 124
        %v1829 = vpop.permute.xlu0 %1828
        %1830 = vrot.lane.b32.xlu0 %v723, 124
        %v1831 = vpop.permute.xlu0 %1830
        %1832 = vrot.lane.b32.xlu0 %v724, 124
        %v1833 = vpop.permute.xlu0 %1832
        %1834 = vrot.lane.b32.xlu0 %v725, 124
        %v1835 = vpop.permute.xlu0 %1834
        %1836 = vrot.lane.b32.xlu0 %v726, 124
        %v1837 = vpop.permute.xlu0 %1836
        %1838 = vrot.lane.b32.xlu0 %v727, 124
        %v1839 = vpop.permute.xlu0 %1838
        %1840 = vrot.lane.b32.xlu0 %v728, 124
        %v1841 = vpop.permute.xlu0 %1840
        %1842 = vrot.lane.b32.xlu0 %v729, 124
        %v1843 = vpop.permute.xlu0 %1842
        %1844 = vrot.lane.b32.xlu0 %v730, 124
        %v1845 = vpop.permute.xlu0 %1844
        %1846 = vrot.lane.b32.xlu0 %v731, 124
        %v1847 = vpop.permute.xlu0 %1846
        %1848 = vrot.lane.b32.xlu0 %v732, 124
        %v1849 = vpop.permute.xlu0 %1848
        %1850 = vrot.lane.b32.xlu0 %v733, 124
        %v1851 = vpop.permute.xlu0 %1850
        %1852 = vrot.lane.b32.xlu0 %v734, 124
        %v1853 = vpop.permute.xlu0 %1852
        %1854 = vrot.lane.b32.xlu0 %v735, 124
        %v1855 = vpop.permute.xlu0 %1854
        %1856 = vrot.lane.b32.xlu0 %v736, 124
        %v1857 = vpop.permute.xlu0 %1856
        %1858 = vrot.lane.b32.xlu0 %v737, 124
        %v1859 = vpop.permute.xlu0 %1858
        %1860 = vrot.lane.b32.xlu0 %v738, 124
        %v1861 = vpop.permute.xlu0 %1860
        %1862 = vrot.lane.b32.xlu0 %v739, 124
        %v1863 = vpop.permute.xlu0 %1862
        %1864 = vrot.lane.b32.xlu0 %v740, 124
        %v1865 = vpop.permute.xlu0 %1864
        %1866 = vrot.lane.b32.xlu0 %v741, 124
        %v1867 = vpop.permute.xlu0 %1866
        %1868 = vrot.lane.b32.xlu0 %v742, 124
        %v1869 = vpop.permute.xlu0 %1868
        %1870 = vrot.lane.b32.xlu0 %v743, 124
        %v1871 = vpop.permute.xlu0 %1870
        %1872 = vrot.lane.b32.xlu0 %v744, 124
        %v1873 = vpop.permute.xlu0 %1872
        %1874 = vrot.lane.b32.xlu0 %v745, 124
        %v1875 = vpop.permute.xlu0 %1874
        %1876 = vrot.lane.b32.xlu0 %v746, 124
        %v1877 = vpop.permute.xlu0 %1876
        %1878 = vrot.lane.b32.xlu0 %v476, 116
        %v1879 = vpop.permute.xlu0 %1878
        %1880 = vrot.lane.b32.xlu0 %v481, 116
        %v1881 = vpop.permute.xlu0 %1880
        %1882 = vrot.lane.b32.xlu0 %v486, 116
        %v1883 = vpop.permute.xlu0 %1882
        %1884 = vrot.lane.b32.xlu0 %v491, 116
        %v1885 = vpop.permute.xlu0 %1884
        %1886 = vrot.lane.b32.xlu0 %v496, 116
        %v1887 = vpop.permute.xlu0 %1886
        %1888 = vrot.lane.b32.xlu0 %v501, 116
        %v1889 = vpop.permute.xlu0 %1888
        %1890 = vrot.lane.b32.xlu0 %v506, 116
        %v1891 = vpop.permute.xlu0 %1890
        %1892 = vrot.lane.b32.xlu0 %v511, 116
        %v1893 = vpop.permute.xlu0 %1892
        %1894 = vrot.lane.b32.xlu0 %v516, 116
        %v1895 = vpop.permute.xlu0 %1894
        %1896 = vrot.lane.b32.xlu0 %v521, 116
        %v1897 = vpop.permute.xlu0 %1896
        %1898 = vrot.lane.b32.xlu0 %v526, 116
        %v1899 = vpop.permute.xlu0 %1898
        %1900 = vrot.lane.b32.xlu0 %v531, 116
        %v1901 = vpop.permute.xlu0 %1900
        %1902 = vrot.lane.b32.xlu0 %v536, 116
        %v1903 = vpop.permute.xlu0 %1902
        %1904 = vrot.lane.b32.xlu0 %v541, 116
        %v1905 = vpop.permute.xlu0 %1904
        %1906 = vrot.lane.b32.xlu0 %v546, 116
        %v1907 = vpop.permute.xlu0 %1906
        %1908 = vrot.lane.b32.xlu0 %v551, 116
        %v1909 = vpop.permute.xlu0 %1908
        %1910 = vrot.lane.b32.xlu0 %v556, 116
        %v1911 = vpop.permute.xlu0 %1910
        %1912 = vrot.lane.b32.xlu0 %v561, 116
        %v1913 = vpop.permute.xlu0 %1912
        %1914 = vrot.lane.b32.xlu0 %v566, 116
        %v1915 = vpop.permute.xlu0 %1914
        %1916 = vrot.lane.b32.xlu0 %v571, 116
        %v1917 = vpop.permute.xlu0 %1916
        %1918 = vrot.lane.b32.xlu0 %v576, 116
        %v1919 = vpop.permute.xlu0 %1918
        %1920 = vrot.lane.b32.xlu0 %v581, 116
        %v1921 = vpop.permute.xlu0 %1920
        %1922 = vrot.lane.b32.xlu0 %v586, 116
        %v1923 = vpop.permute.xlu0 %1922
        %1924 = vrot.lane.b32.xlu0 %v591, 116
        %v1925 = vpop.permute.xlu0 %1924
        %1926 = vrot.lane.b32.xlu0 %v596, 116
        %v1927 = vpop.permute.xlu0 %1926
        %1928 = vrot.lane.b32.xlu0 %v601, 116
        %v1929 = vpop.permute.xlu0 %1928
        %1930 = vrot.lane.b32.xlu0 %v606, 116
        %v1931 = vpop.permute.xlu0 %1930
        %1932 = vrot.lane.b32.xlu0 %v611, 116
        %v1933 = vpop.permute.xlu0 %1932
        %1934 = vrot.lane.b32.xlu0 %v616, 116
        %v1935 = vpop.permute.xlu0 %1934
        %1936 = vrot.lane.b32.xlu0 %v621, 116
        %v1937 = vpop.permute.xlu0 %1936
        %1938 = vrot.lane.b32.xlu0 %v626, 116
        %v1939 = vpop.permute.xlu0 %1938
        %1940 = vrot.lane.b32.xlu0 %v631, 116
        %v1941 = vpop.permute.xlu0 %1940
        %v1942 = vsel %vm843, %v1815, 0
        %v1944 = vsel %vm843, %v1817, 0
        %v1946 = vsel %vm843, %v1819, 0
        %v1948 = vsel %vm843, %v1821, 0
        %v1950 = vsel %vm843, %v1823, 0
        %v1952 = vsel %vm843, %v1825, 0
        %v1954 = vsel %vm843, %v1827, 0
        %v1956 = vsel %vm843, %v1829, 0
        %v1958 = vsel %vm843, %v1831, 0
        %v1960 = vsel %vm843, %v1833, 0
        %v1962 = vsel %vm843, %v1835, 0
        %v1964 = vsel %vm843, %v1837, 0
        %v1966 = vsel %vm843, %v1839, 0
        %v1968 = vsel %vm843, %v1841, 0
        %v1970 = vsel %vm843, %v1843, 0
        %v1972 = vsel %vm843, %v1845, 0
        %v1974 = vsel %vm843, %v1847, 0
        %v1976 = vsel %vm843, %v1849, 0
        %v1978 = vsel %vm843, %v1851, 0
        %v1980 = vsel %vm843, %v1853, 0
        %v1982 = vsel %vm843, %v1855, 0
        %v1984 = vsel %vm843, %v1857, 0
        %v1986 = vsel %vm843, %v1859, 0
        %v1988 = vsel %vm843, %v1861, 0
        %v1990 = vsel %vm843, %v1863, 0
        %v1992 = vsel %vm843, %v1865, 0
        %v1994 = vsel %vm843, %v1867, 0
        %v1996 = vsel %vm843, %v1869, 0
        %v1998 = vsel %vm843, %v1871, 0
        %v2000 = vsel %vm843, %v1873, 0
        %v2002 = vsel %vm843, %v1875, 0
        %v2004 = vsel %vm843, %v1877, 0
        %v2006 = vsel %vm843, %v1879, 0
        %v2008 = vsel %vm843, %v1881, 0
        %v2010 = vsel %vm843, %v1883, 0
        %v2012 = vsel %vm843, %v1885, 0
        %v2014 = vsel %vm843, %v1887, 0
        %v2016 = vsel %vm843, %v1889, 0
        %v2018 = vsel %vm843, %v1891, 0
        %v2020 = vsel %vm843, %v1893, 0
        %v2022 = vsel %vm843, %v1895, 0
        %v2024 = vsel %vm843, %v1897, 0
        %v2026 = vsel %vm843, %v1899, 0
        %v2028 = vsel %vm843, %v1901, 0
        %v2030 = vsel %vm843, %v1903, 0
        %v2032 = vsel %vm843, %v1905, 0
        %v2034 = vsel %vm843, %v1907, 0
        %v2036 = vsel %vm843, %v1909, 0
        %v2038 = vsel %vm843, %v1911, 0
        %v2040 = vsel %vm843, %v1913, 0
        %v2042 = vsel %vm843, %v1915, 0
        %v2044 = vsel %vm843, %v1917, 0
        %v2046 = vsel %vm843, %v1919, 0
        %v2048 = vsel %vm843, %v1921, 0
        %v2050 = vsel %vm843, %v1923, 0
        %v2052 = vsel %vm843, %v1925, 0
        %v2054 = vsel %vm843, %v1927, 0
        %v2056 = vsel %vm843, %v1929, 0
        %v2058 = vsel %vm843, %v1931, 0
        %v2060 = vsel %vm843, %v1933, 0
        %v2062 = vsel %vm843, %v1935, 0
        %v2064 = vsel %vm843, %v1937, 0
        %v2066 = vsel %vm843, %v1939, 0
        %v2068 = vsel %vm843, %v1941, 0
        %2070 = vmatprep.subr.mxu0 0.0
        %2071 = vmatpush1.xpose.msra.mxu0 %v2006
        %2072 = vmatprep.subr.mxu0 0.0
        %2073 = vmatpush1.xpose.msra.mxu0 %v2008
        %2074 = vmatprep.subr.mxu0 0.0
        %2075 = vmatpush1.xpose.msra.mxu0 %v2010
        %2076 = vmatprep.subr.mxu0 0.0
        %2077 = vmatpush1.xpose.msra.mxu0 %v2012
        %2078 = vmatprep.subr.mxu0 0.0
        %2079 = vmatpush1.xpose.msra.mxu0 %v2014
        %2080 = vmatprep.subr.mxu0 0.0
        %2081 = vmatpush1.xpose.msra.mxu0 %v2016
        %2082 = vmatprep.subr.mxu0 0.0
        %2083 = vmatpush1.xpose.msra.mxu0 %v2018
        %2084 = vmatprep.subr.mxu0 0.0
        %2085 = vmatpush1.xpose.msra.mxu0 %v2020
        %2086 = vmatprep.subr.mxu0 0.0
        %2087 = vmatpush1.xpose.msra.mxu0 %v2022
        %2088 = vmatprep.subr.mxu0 0.0
        %2089 = vmatpush1.xpose.msra.mxu0 %v2024
        %2090 = vmatprep.subr.mxu0 0.0
        %2091 = vmatpush1.xpose.msra.mxu0 %v2026
        %2092 = vmatprep.subr.mxu0 0.0
        %2093 = vmatpush1.xpose.msra.mxu0 %v2028
        %2094 = vmatprep.subr.mxu0 0.0
        %2095 = vmatpush1.xpose.msra.mxu0 %v2030
        %2096 = vmatprep.subr.mxu0 0.0
        %2097 = vmatpush1.xpose.msra.mxu0 %v2032
        %2098 = vmatprep.subr.mxu0 0.0
        %2099 = vmatpush1.xpose.msra.mxu0 %v2034
        %2100 = vmatprep.subr.mxu0 0.0
        %2101 = vmatpush1.xpose.msra.mxu0 %v2036
        %2102 = vmatprep.subr.mxu0 0.0
        %2103 = vmatpush1.xpose.msra.mxu0 %v2038
        %2104 = vmatprep.subr.mxu0 0.0
        %2105 = vmatpush1.xpose.msra.mxu0 %v2040
        %2106 = vmatprep.subr.mxu0 0.0
        %2107 = vmatpush1.xpose.msra.mxu0 %v2042
        %2108 = vmatprep.subr.mxu0 0.0
        %2109 = vmatpush1.xpose.msra.mxu0 %v2044
        %2110 = vmatprep.subr.mxu0 0.0
        %2111 = vmatpush1.xpose.msra.mxu0 %v2046
        %2112 = vmatprep.subr.mxu0 0.0
        %2113 = vmatpush1.xpose.msra.mxu0 %v2048
        %2114 = vmatprep.subr.mxu0 0.0
        %2115 = vmatpush1.xpose.msra.mxu0 %v2050
        %2116 = vmatprep.subr.mxu0 0.0
        %2117 = vmatpush1.xpose.msra.mxu0 %v2052
        %2118 = vmatprep.subr.mxu0 0.0
        %2119 = vmatpush1.xpose.msra.mxu0 %v2054
        %2120 = vmatprep.subr.mxu0 0.0
        %2121 = vmatpush1.xpose.msra.mxu0 %v2056
        %2122 = vmatprep.subr.mxu0 0.0
        %2123 = vmatpush1.xpose.msra.mxu0 %v2058
        %2124 = vmatprep.subr.mxu0 0.0
        %2125 = vmatpush1.xpose.msra.mxu0 %v2060
        %2126 = vmatprep.subr.mxu0 0.0
        %2127 = vmatpush1.xpose.msra.mxu0 %v2062
        %2128 = vmatprep.subr.mxu0 0.0
        %2129 = vmatpush1.xpose.msra.mxu0 %v2064
        %2130 = vmatprep.subr.mxu0 0.0
        %2131 = vmatpush1.xpose.msra.mxu0 %v2066
        %2132 = vmatprep.subr.mxu0 0.0
        %2133 = vmatpush1.xpose.msra.mxu0 %v2068
        %2134 = vmatprep.mubr.f32.mxu0 0.0
        %2135 = vmatmul.mubr.f32.gmra.mrb[0].mxu0 %v1942
        %v2136 = vpop.f32.mrb[0].mxu0
        %v2137 = vadd.f32 0.0, %v2136
        %v2138 = vpop.f32.mrb[0].mxu0
        %v2139 = vadd.f32 0.0, %v2138
        %2140 = vmatprep.mubr.f32.mxu0 0.0
        %2141 = vmatmul.mubr.f32.gmra.mrb[0].mxu0 %v1944
        %v2142 = vpop.f32.mrb[0].mxu0
        %v2143 = vadd.f32 0.0, %v2142
        %v2144 = vpop.f32.mrb[0].mxu0
        %v2145 = vadd.f32 0.0, %v2144
        %2146 = vmatprep.mubr.f32.mxu0 0.0
        %2147 = vmatmul.mubr.f32.gmra.mrb[0].mxu0 %v1946
        %v2148 = vpop.f32.mrb[0].mxu0
        %v2149 = vadd.f32 0.0, %v2148
        %v2150 = vpop.f32.mrb[0].mxu0
        %v2151 = vadd.f32 0.0, %v2150
        %2152 = vmatprep.mubr.f32.mxu0 0.0
        %2153 = vmatmul.mubr.f32.gmra.mrb[0].mxu0 %v1948
        %v2154 = vpop.f32.mrb[0].mxu0
        %v2155 = vadd.f32 0.0, %v2154
        %v2156 = vpop.f32.mrb[0].mxu0
        %v2157 = vadd.f32 0.0, %v2156
        %2158 = vmatprep.mubr.f32.mxu0 0.0
        %2159 = vmatmul.mubr.f32.gmra.mrb[0].mxu0 %v1950
        %v2160 = vpop.f32.mrb[0].mxu0
        %v2161 = vadd.f32 0.0, %v2160
        %v2162 = vpop.f32.mrb[0].mxu0
        %v2163 = vadd.f32 0.0, %v2162
        %2164 = vmatprep.mubr.f32.mxu0 0.0
        %2165 = vmatmul.mubr.f32.gmra.mrb[0].mxu0 %v1952
        %v2166 = vpop.f32.mrb[0].mxu0
        %v2167 = vadd.f32 0.0, %v2166
        %v2168 = vpop.f32.mrb[0].mxu0
        %v2169 = vadd.f32 0.0, %v2168
        %2170 = vmatprep.mubr.f32.mxu0 0.0
        %2171 = vmatmul.mubr.f32.gmra.mrb[0].mxu0 %v1954
        %v2172 = vpop.f32.mrb[0].mxu0
        %v2173 = vadd.f32 0.0, %v2172
        %v2174 = vpop.f32.mrb[0].mxu0
        %v2175 = vadd.f32 0.0, %v2174
        %2176 = vmatprep.mubr.f32.mxu0 0.0
        %2177 = vmatmul.mubr.f32.gmra.mrb[0].mxu0 %v1956
        %v2178 = vpop.f32.mrb[0].mxu0
        %v2179 = vadd.f32 0.0, %v2178
        %v2180 = vpop.f32.mrb[0].mxu0
        %v2181 = vadd.f32 0.0, %v2180
        %2182 = vmatprep.mubr.f32.mxu0 0.0
        %2183 = vmatmul.mubr.f32.gmra.mrb[0].mxu0 %v1958
        %v2184 = vpop.f32.mrb[0].mxu0
        %v2185 = vadd.f32 0.0, %v2184
        %v2186 = vpop.f32.mrb[0].mxu0
        %v2187 = vadd.f32 0.0, %v2186
        %2188 = vmatprep.mubr.f32.mxu0 0.0
        %2189 = vmatmul.mubr.f32.gmra.mrb[0].mxu0 %v1960
        %v2190 = vpop.f32.mrb[0].mxu0
        %v2191 = vadd.f32 0.0, %v2190
        %v2192 = vpop.f32.mrb[0].mxu0
        %v2193 = vadd.f32 0.0, %v2192
        %2194 = vmatprep.mubr.f32.mxu0 0.0
        %2195 = vmatmul.mubr.f32.gmra.mrb[0].mxu0 %v1962
        %v2196 = vpop.f32.mrb[0].mxu0
        %v2197 = vadd.f32 0.0, %v2196
        %v2198 = vpop.f32.mrb[0].mxu0
        %v2199 = vadd.f32 0.0, %v2198
        %2200 = vmatprep.mubr.f32.mxu0 0.0
        %2201 = vmatmul.mubr.f32.gmra.mrb[0].mxu0 %v1964
        %v2202 = vpop.f32.mrb[0].mxu0
        %v2203 = vadd.f32 0.0, %v2202
        %v2204 = vpop.f32.mrb[0].mxu0
        %v2205 = vadd.f32 0.0, %v2204
        %2206 = vmatprep.mubr.f32.mxu0 0.0
        %2207 = vmatmul.mubr.f32.gmra.mrb[0].mxu0 %v1966
        %v2208 = vpop.f32.mrb[0].mxu0
        %v2209 = vadd.f32 0.0, %v2208
        %v2210 = vpop.f32.mrb[0].mxu0
        %v2211 = vadd.f32 0.0, %v2210
        %2212 = vmatprep.mubr.f32.mxu0 0.0
        %2213 = vmatmul.mubr.f32.gmra.mrb[0].mxu0 %v1968
        %v2214 = vpop.f32.mrb[0].mxu0
        %v2215 = vadd.f32 0.0, %v2214
        %v2216 = vpop.f32.mrb[0].mxu0
        %v2217 = vadd.f32 0.0, %v2216
        %2218 = vmatprep.mubr.f32.mxu0 0.0
        %2219 = vmatmul.mubr.f32.gmra.mrb[0].mxu0 %v1970
        %v2220 = vpop.f32.mrb[0].mxu0
        %v2221 = vadd.f32 0.0, %v2220
        %v2222 = vpop.f32.mrb[0].mxu0
        %v2223 = vadd.f32 0.0, %v2222
        %2224 = vmatprep.mubr.f32.mxu0 0.0
        %2225 = vmatmul.mubr.f32.gmra.mrb[0].mxu0 %v1972
        %v2226 = vpop.f32.mrb[0].mxu0
        %v2227 = vadd.f32 0.0, %v2226
        %v2228 = vpop.f32.mrb[0].mxu0
        %v2229 = vadd.f32 0.0, %v2228
        %2230 = vmatprep.mubr.f32.mxu0 0.0
        %2231 = vmatmul.mubr.f32.gmra.mrb[0].mxu0 %v1974
        %v2232 = vpop.f32.mrb[0].mxu0
        %v2233 = vadd.f32 0.0, %v2232
        %v2234 = vpop.f32.mrb[0].mxu0
        %v2235 = vadd.f32 0.0, %v2234
        %2236 = vmatprep.mubr.f32.mxu0 0.0
        %2237 = vmatmul.mubr.f32.gmra.mrb[0].mxu0 %v1976
        %v2238 = vpop.f32.mrb[0].mxu0
        %v2239 = vadd.f32 0.0, %v2238
        %v2240 = vpop.f32.mrb[0].mxu0
        %v2241 = vadd.f32 0.0, %v2240
        %2242 = vmatprep.mubr.f32.mxu0 0.0
        %2243 = vmatmul.mubr.f32.gmra.mrb[0].mxu0 %v1978
        %v2244 = vpop.f32.mrb[0].mxu0
        %v2245 = vadd.f32 0.0, %v2244
        %v2246 = vpop.f32.mrb[0].mxu0
        %v2247 = vadd.f32 0.0, %v2246
        %2248 = vmatprep.mubr.f32.mxu0 0.0
        %2249 = vmatmul.mubr.f32.gmra.mrb[0].mxu0 %v1980
        %v2250 = vpop.f32.mrb[0].mxu0
        %v2251 = vadd.f32 0.0, %v2250
        %v2252 = vpop.f32.mrb[0].mxu0
        %v2253 = vadd.f32 0.0, %v2252
        %2254 = vmatprep.mubr.f32.mxu0 0.0
        %2255 = vmatmul.mubr.f32.gmra.mrb[0].mxu0 %v1982
        %v2256 = vpop.f32.mrb[0].mxu0
        %v2257 = vadd.f32 0.0, %v2256
        %v2258 = vpop.f32.mrb[0].mxu0
        %v2259 = vadd.f32 0.0, %v2258
        %2260 = vmatprep.mubr.f32.mxu0 0.0
        %2261 = vmatmul.mubr.f32.gmra.mrb[0].mxu0 %v1984
        %v2262 = vpop.f32.mrb[0].mxu0
        %v2263 = vadd.f32 0.0, %v2262
        %v2264 = vpop.f32.mrb[0].mxu0
        %v2265 = vadd.f32 0.0, %v2264
        %2266 = vmatprep.mubr.f32.mxu0 0.0
        %2267 = vmatmul.mubr.f32.gmra.mrb[0].mxu0 %v1986
        %v2268 = vpop.f32.mrb[0].mxu0
        %v2269 = vadd.f32 0.0, %v2268
        %v2270 = vpop.f32.mrb[0].mxu0
        %v2271 = vadd.f32 0.0, %v2270
        %2272 = vmatprep.mubr.f32.mxu0 0.0
        %2273 = vmatmul.mubr.f32.gmra.mrb[0].mxu0 %v1988
        %v2274 = vpop.f32.mrb[0].mxu0
        %v2275 = vadd.f32 0.0, %v2274
        %v2276 = vpop.f32.mrb[0].mxu0
        %v2277 = vadd.f32 0.0, %v2276
        %2278 = vmatprep.mubr.f32.mxu0 0.0
        %2279 = vmatmul.mubr.f32.gmra.mrb[0].mxu0 %v1990
        %v2280 = vpop.f32.mrb[0].mxu0
        %v2281 = vadd.f32 0.0, %v2280
        %v2282 = vpop.f32.mrb[0].mxu0
        %v2283 = vadd.f32 0.0, %v2282
        %2284 = vmatprep.mubr.f32.mxu0 0.0
        %2285 = vmatmul.mubr.f32.gmra.mrb[0].mxu0 %v1992
        %v2286 = vpop.f32.mrb[0].mxu0
        %v2287 = vadd.f32 0.0, %v2286
        %v2288 = vpop.f32.mrb[0].mxu0
        %v2289 = vadd.f32 0.0, %v2288
        %2290 = vmatprep.mubr.f32.mxu0 0.0
        %2291 = vmatmul.mubr.f32.gmra.mrb[0].mxu0 %v1994
        %v2292 = vpop.f32.mrb[0].mxu0
        %v2293 = vadd.f32 0.0, %v2292
        %v2294 = vpop.f32.mrb[0].mxu0
        %v2295 = vadd.f32 0.0, %v2294
        %2296 = vmatprep.mubr.f32.mxu0 0.0
        %2297 = vmatmul.mubr.f32.gmra.mrb[0].mxu0 %v1996
        %v2298 = vpop.f32.mrb[0].mxu0
        %v2299 = vadd.f32 0.0, %v2298
        %v2300 = vpop.f32.mrb[0].mxu0
        %v2301 = vadd.f32 0.0, %v2300
        %2302 = vmatprep.mubr.f32.mxu0 0.0
        %2303 = vmatmul.mubr.f32.gmra.mrb[0].mxu0 %v1998
        %v2304 = vpop.f32.mrb[0].mxu0
        %v2305 = vadd.f32 0.0, %v2304
        %v2306 = vpop.f32.mrb[0].mxu0
        %v2307 = vadd.f32 0.0, %v2306
        %2308 = vmatprep.mubr.f32.mxu0 0.0
        %2309 = vmatmul.mubr.f32.gmra.mrb[0].mxu0 %v2000
        %v2310 = vpop.f32.mrb[0].mxu0
        %v2311 = vadd.f32 0.0, %v2310
        %v2312 = vpop.f32.mrb[0].mxu0
        %v2313 = vadd.f32 0.0, %v2312
        %2314 = vmatprep.mubr.f32.mxu0 0.0
        %2315 = vmatmul.mubr.f32.gmra.mrb[0].mxu0 %v2002
        %v2316 = vpop.f32.mrb[0].mxu0
        %v2317 = vadd.f32 0.0, %v2316
        %v2318 = vpop.f32.mrb[0].mxu0
        %v2319 = vadd.f32 0.0, %v2318
        %2320 = vmatprep.mubr.f32.mxu0 0.0
        %2321 = vmatmul.mubr.f32.gmra.mrb[0].mxu0 %v2004
        %v2322 = vpop.f32.mrb[0].mxu0
        %v2323 = vadd.f32 0.0, %v2322
        %v2324 = vpop.f32.mrb[0].mxu0
        %v2325 = vadd.f32 0.0, %v2324
        %2326 = vdwg.mxu0
        %v2327 = vmax.f32 %v2137, %v2139
        %2328 = vmax.xlane.f32.xlu0 %v2327
        %v2329 = vpop.xlane.xlu0 %2328
        %v2330 = vmax.f32 %v2143, %v2145
        %2331 = vmax.xlane.f32.xlu0 %v2330
        %v2332 = vpop.xlane.xlu0 %2331
        %v2333 = vmax.f32 %v2149, %v2151
        %2334 = vmax.xlane.f32.xlu0 %v2333
        %v2335 = vpop.xlane.xlu0 %2334
        %v2336 = vmax.f32 %v2155, %v2157
        %2337 = vmax.xlane.f32.xlu0 %v2336
        %v2338 = vpop.xlane.xlu0 %2337
        %v2339 = vmax.f32 %v2161, %v2163
        %2340 = vmax.xlane.f32.xlu0 %v2339
        %v2341 = vpop.xlane.xlu0 %2340
        %v2342 = vmax.f32 %v2167, %v2169
        %2343 = vmax.xlane.f32.xlu0 %v2342
        %v2344 = vpop.xlane.xlu0 %2343
        %v2345 = vmax.f32 %v2173, %v2175
        %2346 = vmax.xlane.f32.xlu0 %v2345
        %v2347 = vpop.xlane.xlu0 %2346
        %v2348 = vmax.f32 %v2179, %v2181
        %2349 = vmax.xlane.f32.xlu0 %v2348
        %v2350 = vpop.xlane.xlu0 %2349
        %v2351 = vmax.f32 %v2185, %v2187
        %2352 = vmax.xlane.f32.xlu0 %v2351
        %v2353 = vpop.xlane.xlu0 %2352
        %v2354 = vmax.f32 %v2191, %v2193
        %2355 = vmax.xlane.f32.xlu0 %v2354
        %v2356 = vpop.xlane.xlu0 %2355
        %v2357 = vmax.f32 %v2197, %v2199
        %2358 = vmax.xlane.f32.xlu0 %v2357
        %v2359 = vpop.xlane.xlu0 %2358
        %v2360 = vmax.f32 %v2203, %v2205
        %2361 = vmax.xlane.f32.xlu0 %v2360
        %v2362 = vpop.xlane.xlu0 %2361
        %v2363 = vmax.f32 %v2209, %v2211
        %2364 = vmax.xlane.f32.xlu0 %v2363
        %v2365 = vpop.xlane.xlu0 %2364
        %v2366 = vmax.f32 %v2215, %v2217
        %2367 = vmax.xlane.f32.xlu0 %v2366
        %v2368 = vpop.xlane.xlu0 %2367
        %v2369 = vmax.f32 %v2221, %v2223
        %2370 = vmax.xlane.f32.xlu0 %v2369
        %v2371 = vpop.xlane.xlu0 %2370
        %v2372 = vmax.f32 %v2227, %v2229
        %2373 = vmax.xlane.f32.xlu0 %v2372
        %v2374 = vpop.xlane.xlu0 %2373
        %v2375 = vmax.f32 %v2233, %v2235
        %2376 = vmax.xlane.f32.xlu0 %v2375
        %v2377 = vpop.xlane.xlu0 %2376
        %v2378 = vmax.f32 %v2239, %v2241
        %2379 = vmax.xlane.f32.xlu0 %v2378
        %v2380 = vpop.xlane.xlu0 %2379
        %v2381 = vmax.f32 %v2245, %v2247
        %2382 = vmax.xlane.f32.xlu0 %v2381
        %v2383 = vpop.xlane.xlu0 %2382
        %v2384 = vmax.f32 %v2251, %v2253
        %2385 = vmax.xlane.f32.xlu0 %v2384
        %v2386 = vpop.xlane.xlu0 %2385
        %v2387 = vmax.f32 %v2257, %v2259
        %2388 = vmax.xlane.f32.xlu0 %v2387
        %v2389 = vpop.xlane.xlu0 %2388
        %v2390 = vmax.f32 %v2263, %v2265
        %2391 = vmax.xlane.f32.xlu0 %v2390
        %v2392 = vpop.xlane.xlu0 %2391
        %v2393 = vmax.f32 %v2269, %v2271
        %2394 = vmax.xlane.f32.xlu0 %v2393
        %v2395 = vpop.xlane.xlu0 %2394
        %v2396 = vmax.f32 %v2275, %v2277
        %2397 = vmax.xlane.f32.xlu0 %v2396
        %v2398 = vpop.xlane.xlu0 %2397
        %v2399 = vmax.f32 %v2281, %v2283
        %2400 = vmax.xlane.f32.xlu0 %v2399
        %v2401 = vpop.xlane.xlu0 %2400
        %v2402 = vmax.f32 %v2287, %v2289
        %2403 = vmax.xlane.f32.xlu0 %v2402
        %v2404 = vpop.xlane.xlu0 %2403
        %v2405 = vmax.f32 %v2293, %v2295
        %2406 = vmax.xlane.f32.xlu0 %v2405
        %v2407 = vpop.xlane.xlu0 %2406
        %v2408 = vmax.f32 %v2299, %v2301
        %2409 = vmax.xlane.f32.xlu0 %v2408
        %v2410 = vpop.xlane.xlu0 %2409
        %v2411 = vmax.f32 %v2305, %v2307
        %2412 = vmax.xlane.f32.xlu0 %v2411
        %v2413 = vpop.xlane.xlu0 %2412
        %v2414 = vmax.f32 %v2311, %v2313
        %2415 = vmax.xlane.f32.xlu0 %v2414
        %v2416 = vpop.xlane.xlu0 %2415
        %v2417 = vmax.f32 %v2317, %v2319
        %2418 = vmax.xlane.f32.xlu0 %v2417
        %v2419 = vpop.xlane.xlu0 %2418
        %v2420 = vmax.f32 %v2323, %v2325
        %2421 = vmax.xlane.f32.xlu0 %v2420
        %v2422 = vpop.xlane.xlu0 %2421
        %v2423 = vsub.f32 %v2137, %v2329
        %v2424 = vsub.f32 %v2139, %v2329
        %v2425 = vsub.f32 %v2143, %v2332
        %v2426 = vsub.f32 %v2145, %v2332
        %v2427 = vsub.f32 %v2149, %v2335
        %v2428 = vsub.f32 %v2151, %v2335
        %v2429 = vsub.f32 %v2155, %v2338
        %v2430 = vsub.f32 %v2157, %v2338
        %v2431 = vsub.f32 %v2161, %v2341
        %v2432 = vsub.f32 %v2163, %v2341
        %v2433 = vsub.f32 %v2167, %v2344
        %v2434 = vsub.f32 %v2169, %v2344
        %v2435 = vsub.f32 %v2173, %v2347
        %v2436 = vsub.f32 %v2175, %v2347
        %v2437 = vsub.f32 %v2179, %v2350
        %v2438 = vsub.f32 %v2181, %v2350
        %v2439 = vsub.f32 %v2185, %v2353
        %v2440 = vsub.f32 %v2187, %v2353
        %v2441 = vsub.f32 %v2191, %v2356
        %v2442 = vsub.f32 %v2193, %v2356
        %v2443 = vsub.f32 %v2197, %v2359
        %v2444 = vsub.f32 %v2199, %v2359
        %v2445 = vsub.f32 %v2203, %v2362
        %v2446 = vsub.f32 %v2205, %v2362
        %v2447 = vsub.f32 %v2209, %v2365
        %v2448 = vsub.f32 %v2211, %v2365
        %v2449 = vsub.f32 %v2215, %v2368
        %v2450 = vsub.f32 %v2217, %v2368
        %v2451 = vsub.f32 %v2221, %v2371
        %v2452 = vsub.f32 %v2223, %v2371
        %v2453 = vsub.f32 %v2227, %v2374
        %v2454 = vsub.f32 %v2229, %v2374
        %v2455 = vsub.f32 %v2233, %v2377
        %v2456 = vsub.f32 %v2235, %v2377
        %v2457 = vsub.f32 %v2239, %v2380
        %v2458 = vsub.f32 %v2241, %v2380
        %v2459 = vsub.f32 %v2245, %v2383
        %v2460 = vsub.f32 %v2247, %v2383
        %v2461 = vsub.f32 %v2251, %v2386
        %v2462 = vsub.f32 %v2253, %v2386
        %v2463 = vsub.f32 %v2257, %v2389
        %v2464 = vsub.f32 %v2259, %v2389
        %v2465 = vsub.f32 %v2263, %v2392
        %v2466 = vsub.f32 %v2265, %v2392
        %v2467 = vsub.f32 %v2269, %v2395
        %v2468 = vsub.f32 %v2271, %v2395
        %v2469 = vsub.f32 %v2275, %v2398
        %v2470 = vsub.f32 %v2277, %v2398
        %v2471 = vsub.f32 %v2281, %v2401
        %v2472 = vsub.f32 %v2283, %v2401
        %v2473 = vsub.f32 %v2287, %v2404
        %v2474 = vsub.f32 %v2289, %v2404
        %v2475 = vsub.f32 %v2293, %v2407
        %v2476 = vsub.f32 %v2295, %v2407
        %v2477 = vsub.f32 %v2299, %v2410
        %v2478 = vsub.f32 %v2301, %v2410
        %v2479 = vsub.f32 %v2305, %v2413
        %v2480 = vsub.f32 %v2307, %v2413
        %v2481 = vsub.f32 %v2311, %v2416
        %v2482 = vsub.f32 %v2313, %v2416
        %v2483 = vsub.f32 %v2317, %v2419
        %v2484 = vsub.f32 %v2319, %v2419
        %v2485 = vsub.f32 %v2323, %v2422
        %v2486 = vsub.f32 %v2325, %v2422
        %v2487 = vmul.f32 %v2423, 1.442695
        %v2488 = vpow.pop %v2487
        %v2489 = vmul.f32 %v2424, 1.442695
        %v2490 = vpow.pop %v2489
        %v2491 = vmul.f32 %v2425, 1.442695
        %v2492 = vpow.pop %v2491
        %v2493 = vmul.f32 %v2426, 1.442695
        %v2494 = vpow.pop %v2493
        %v2495 = vmul.f32 %v2427, 1.442695
        %v2496 = vpow.pop %v2495
        %v2497 = vmul.f32 %v2428, 1.442695
        %v2498 = vpow.pop %v2497
        %v2499 = vmul.f32 %v2429, 1.442695
        %v2500 = vpow.pop %v2499
        %v2501 = vmul.f32 %v2430, 1.442695
        %v2502 = vpow.pop %v2501
        %v2503 = vmul.f32 %v2431, 1.442695
        %v2504 = vpow.pop %v2503
        %v2505 = vmul.f32 %v2432, 1.442695
        %v2506 = vpow.pop %v2505
        %v2507 = vmul.f32 %v2433, 1.442695
        %v2508 = vpow.pop %v2507
        %v2509 = vmul.f32 %v2434, 1.442695
        %v2510 = vpow.pop %v2509
        %v2511 = vmul.f32 %v2435, 1.442695
        %v2512 = vpow.pop %v2511
        %v2513 = vmul.f32 %v2436, 1.442695
        %v2514 = vpow.pop %v2513
        %v2515 = vmul.f32 %v2437, 1.442695
        %v2516 = vpow.pop %v2515
        %v2517 = vmul.f32 %v2438, 1.442695
        %v2518 = vpow.pop %v2517
        %v2519 = vmul.f32 %v2439, 1.442695
        %v2520 = vpow.pop %v2519
        %v2521 = vmul.f32 %v2440, 1.442695
        %v2522 = vpow.pop %v2521
        %v2523 = vmul.f32 %v2441, 1.442695
        %v2524 = vpow.pop %v2523
        %v2525 = vmul.f32 %v2442, 1.442695
        %v2526 = vpow.pop %v2525
        %v2527 = vmul.f32 %v2443, 1.442695
        %v2528 = vpow.pop %v2527
        %v2529 = vmul.f32 %v2444, 1.442695
        %v2530 = vpow.pop %v2529
        %v2531 = vmul.f32 %v2445, 1.442695
        %v2532 = vpow.pop %v2531
        %v2533 = vmul.f32 %v2446, 1.442695
        %v2534 = vpow.pop %v2533
        %v2535 = vmul.f32 %v2447, 1.442695
        %v2536 = vpow.pop %v2535
        %v2537 = vmul.f32 %v2448, 1.442695
        %v2538 = vpow.pop %v2537
        %v2539 = vmul.f32 %v2449, 1.442695
        %v2540 = vpow.pop %v2539
        %v2541 = vmul.f32 %v2450, 1.442695
        %v2542 = vpow.pop %v2541
        %v2543 = vmul.f32 %v2451, 1.442695
        %v2544 = vpow.pop %v2543
        %v2545 = vmul.f32 %v2452, 1.442695
        %v2546 = vpow.pop %v2545
        %v2547 = vmul.f32 %v2453, 1.442695
        %v2548 = vpow.pop %v2547
        %v2549 = vmul.f32 %v2454, 1.442695
        %v2550 = vpow.pop %v2549
        %v2551 = vmul.f32 %v2455, 1.442695
        %v2552 = vpow.pop %v2551
        %v2553 = vmul.f32 %v2456, 1.442695
        %v2554 = vpow.pop %v2553
        %v2555 = vmul.f32 %v2457, 1.442695
        %v2556 = vpow.pop %v2555
        %v2557 = vmul.f32 %v2458, 1.442695
        %v2558 = vpow.pop %v2557
        %v2559 = vmul.f32 %v2459, 1.442695
        %v2560 = vpow.pop %v2559
        %v2561 = vmul.f32 %v2460, 1.442695
        %v2562 = vpow.pop %v2561
        %v2563 = vmul.f32 %v2461, 1.442695
        %v2564 = vpow.pop %v2563
        %v2565 = vmul.f32 %v2462, 1.442695
        %v2566 = vpow.pop %v2565
        %v2567 = vmul.f32 %v2463, 1.442695
        %v2568 = vpow.pop %v2567
        %v2569 = vmul.f32 %v2464, 1.442695
        %v2570 = vpow.pop %v2569
        %v2571 = vmul.f32 %v2465, 1.442695
        %v2572 = vpow.pop %v2571
        %v2573 = vmul.f32 %v2466, 1.442695
        %v2574 = vpow.pop %v2573
        %v2575 = vmul.f32 %v2467, 1.442695
        %v2576 = vpow.pop %v2575
        %v2577 = vmul.f32 %v2468, 1.442695
        %v2578 = vpow.pop %v2577
        %v2579 = vmul.f32 %v2469, 1.442695
        %v2580 = vpow.pop %v2579
        %v2581 = vmul.f32 %v2470, 1.442695
        %v2582 = vpow.pop %v2581
        %v2583 = vmul.f32 %v2471, 1.442695
        %v2584 = vpow.pop %v2583
        %v2585 = vmul.f32 %v2472, 1.442695
        %v2586 = vpow.pop %v2585
        %v2587 = vmul.f32 %v2473, 1.442695
        %v2588 = vpow.pop %v2587
        %v2589 = vmul.f32 %v2474, 1.442695
        %v2590 = vpow.pop %v2589
        %v2591 = vmul.f32 %v2475, 1.442695
        %v2592 = vpow.pop %v2591
        %v2593 = vmul.f32 %v2476, 1.442695
        %v2594 = vpow.pop %v2593
        %v2595 = vmul.f32 %v2477, 1.442695
        %v2596 = vpow.pop %v2595
        %v2597 = vmul.f32 %v2478, 1.442695
        %v2598 = vpow.pop %v2597
        %v2599 = vmul.f32 %v2479, 1.442695
        %v2600 = vpow.pop %v2599
        %v2601 = vmul.f32 %v2480, 1.442695
        %v2602 = vpow.pop %v2601
        %v2603 = vmul.f32 %v2481, 1.442695
        %v2604 = vpow.pop %v2603
        %v2605 = vmul.f32 %v2482, 1.442695
        %v2606 = vpow.pop %v2605
        %v2607 = vmul.f32 %v2483, 1.442695
        %v2608 = vpow.pop %v2607
        %v2609 = vmul.f32 %v2484, 1.442695
        %v2610 = vpow.pop %v2609
        %v2611 = vmul.f32 %v2485, 1.442695
        %v2612 = vpow.pop %v2611
        %v2613 = vmul.f32 %v2486, 1.442695
        %v2614 = vpow.pop %v2613
        %v2615 = vadd.f32 %v2488, %v2490
        %2616 = vadd.xlane.f32.xlu0 %v2615
        %v2617 = vpop.xlane.xlu0 %2616
        %v2618 = vadd.f32 %v2492, %v2494
        %2619 = vadd.xlane.f32.xlu0 %v2618
        %v2620 = vpop.xlane.xlu0 %2619
        %v2621 = vadd.f32 %v2496, %v2498
        %2622 = vadd.xlane.f32.xlu0 %v2621
        %v2623 = vpop.xlane.xlu0 %2622
        %v2624 = vadd.f32 %v2500, %v2502
        %2625 = vadd.xlane.f32.xlu0 %v2624
        %v2626 = vpop.xlane.xlu0 %2625
        %v2627 = vadd.f32 %v2504, %v2506
        %2628 = vadd.xlane.f32.xlu0 %v2627
        %v2629 = vpop.xlane.xlu0 %2628
        %v2630 = vadd.f32 %v2508, %v2510
        %2631 = vadd.xlane.f32.xlu0 %v2630
        %v2632 = vpop.xlane.xlu0 %2631
        %v2633 = vadd.f32 %v2512, %v2514
        %2634 = vadd.xlane.f32.xlu0 %v2633
        %v2635 = vpop.xlane.xlu0 %2634
        %v2636 = vadd.f32 %v2516, %v2518
        %2637 = vadd.xlane.f32.xlu0 %v2636
        %v2638 = vpop.xlane.xlu0 %2637
        %v2639 = vadd.f32 %v2520, %v2522
        %2640 = vadd.xlane.f32.xlu0 %v2639
        %v2641 = vpop.xlane.xlu0 %2640
        %v2642 = vadd.f32 %v2524, %v2526
        %2643 = vadd.xlane.f32.xlu0 %v2642
        %v2644 = vpop.xlane.xlu0 %2643
        %v2645 = vadd.f32 %v2528, %v2530
        %2646 = vadd.xlane.f32.xlu0 %v2645
        %v2647 = vpop.xlane.xlu0 %2646
        %v2648 = vadd.f32 %v2532, %v2534
        %2649 = vadd.xlane.f32.xlu0 %v2648
        %v2650 = vpop.xlane.xlu0 %2649
        %v2651 = vadd.f32 %v2536, %v2538
        %2652 = vadd.xlane.f32.xlu0 %v2651
        %v2653 = vpop.xlane.xlu0 %2652
        %v2654 = vadd.f32 %v2540, %v2542
        %2655 = vadd.xlane.f32.xlu0 %v2654
        %v2656 = vpop.xlane.xlu0 %2655
        %v2657 = vadd.f32 %v2544, %v2546
        %2658 = vadd.xlane.f32.xlu0 %v2657
        %v2659 = vpop.xlane.xlu0 %2658
        %v2660 = vadd.f32 %v2548, %v2550
        %2661 = vadd.xlane.f32.xlu0 %v2660
        %v2662 = vpop.xlane.xlu0 %2661
        %v2663 = vadd.f32 %v2552, %v2554
        %2664 = vadd.xlane.f32.xlu0 %v2663
        %v2665 = vpop.xlane.xlu0 %2664
        %v2666 = vadd.f32 %v2556, %v2558
        %2667 = vadd.xlane.f32.xlu0 %v2666
        %v2668 = vpop.xlane.xlu0 %2667
        %v2669 = vadd.f32 %v2560, %v2562
        %2670 = vadd.xlane.f32.xlu0 %v2669
        %v2671 = vpop.xlane.xlu0 %2670
        %v2672 = vadd.f32 %v2564, %v2566
        %2673 = vadd.xlane.f32.xlu0 %v2672
        %v2674 = vpop.xlane.xlu0 %2673
        %v2675 = vadd.f32 %v2568, %v2570
        %2676 = vadd.xlane.f32.xlu0 %v2675
        %v2677 = vpop.xlane.xlu0 %2676
        %v2678 = vadd.f32 %v2572, %v2574
        %2679 = vadd.xlane.f32.xlu0 %v2678
        %v2680 = vpop.xlane.xlu0 %2679
        %v2681 = vadd.f32 %v2576, %v2578
        %2682 = vadd.xlane.f32.xlu0 %v2681
        %v2683 = vpop.xlane.xlu0 %2682
        %v2684 = vadd.f32 %v2580, %v2582
        %2685 = vadd.xlane.f32.xlu0 %v2684
        %v2686 = vpop.xlane.xlu0 %2685
        %v2687 = vadd.f32 %v2584, %v2586
        %2688 = vadd.xlane.f32.xlu0 %v2687
        %v2689 = vpop.xlane.xlu0 %2688
        %v2690 = vadd.f32 %v2588, %v2590
        %2691 = vadd.xlane.f32.xlu0 %v2690
        %v2692 = vpop.xlane.xlu0 %2691
        %v2693 = vadd.f32 %v2592, %v2594
        %2694 = vadd.xlane.f32.xlu0 %v2693
        %v2695 = vpop.xlane.xlu0 %2694
        %v2696 = vadd.f32 %v2596, %v2598
        %2697 = vadd.xlane.f32.xlu0 %v2696
        %v2698 = vpop.xlane.xlu0 %2697
        %v2699 = vadd.f32 %v2600, %v2602
        %2700 = vadd.xlane.f32.xlu0 %v2699
        %v2701 = vpop.xlane.xlu0 %2700
        %v2702 = vadd.f32 %v2604, %v2606
        %2703 = vadd.xlane.f32.xlu0 %v2702
        %v2704 = vpop.xlane.xlu0 %2703
        %v2705 = vadd.f32 %v2608, %v2610
        %2706 = vadd.xlane.f32.xlu0 %v2705
        %v2707 = vpop.xlane.xlu0 %2706
        %v2708 = vadd.f32 %v2612, %v2614
        %2709 = vadd.xlane.f32.xlu0 %v2708
        %v2710 = vpop.xlane.xlu0 %2709
        %v2711 = vrcp.pop %v2617
        %v2712 = vrcp.pop %v2620
        %v2713 = vrcp.pop %v2623
        %v2714 = vrcp.pop %v2626
        %v2715 = vrcp.pop %v2629
        %v2716 = vrcp.pop %v2632
        %v2717 = vrcp.pop %v2635
        %v2718 = vrcp.pop %v2638
        %v2719 = vrcp.pop %v2641
        %v2720 = vrcp.pop %v2644
        %v2721 = vrcp.pop %v2647
        %v2722 = vrcp.pop %v2650
        %v2723 = vrcp.pop %v2653
        %v2724 = vrcp.pop %v2656
        %v2725 = vrcp.pop %v2659
        %v2726 = vrcp.pop %v2662
        %v2727 = vrcp.pop %v2665
        %v2728 = vrcp.pop %v2668
        %v2729 = vrcp.pop %v2671
        %v2730 = vrcp.pop %v2674
        %v2731 = vrcp.pop %v2677
        %v2732 = vrcp.pop %v2680
        %v2733 = vrcp.pop %v2683
        %v2734 = vrcp.pop %v2686
        %v2735 = vrcp.pop %v2689
        %v2736 = vrcp.pop %v2692
        %v2737 = vrcp.pop %v2695
        %v2738 = vrcp.pop %v2698
        %v2739 = vrcp.pop %v2701
        %v2740 = vrcp.pop %v2704
        %v2741 = vrcp.pop %v2707
        %v2742 = vrcp.pop %v2710
        %v2743 = vmul.f32 %v2488, %v2711
        %v2744 = vmul.f32 %v2490, %v2711
        %v2745 = vmul.f32 %v2492, %v2712
        %v2746 = vmul.f32 %v2494, %v2712
        %v2747 = vmul.f32 %v2496, %v2713
        %v2748 = vmul.f32 %v2498, %v2713
        %v2749 = vmul.f32 %v2500, %v2714
        %v2750 = vmul.f32 %v2502, %v2714
        %v2751 = vmul.f32 %v2504, %v2715
        %v2752 = vmul.f32 %v2506, %v2715
        %v2753 = vmul.f32 %v2508, %v2716
        %v2754 = vmul.f32 %v2510, %v2716
        %v2755 = vmul.f32 %v2512, %v2717
        %v2756 = vmul.f32 %v2514, %v2717
        %v2757 = vmul.f32 %v2516, %v2718
        %v2758 = vmul.f32 %v2518, %v2718
        %v2759 = vmul.f32 %v2520, %v2719
        %v2760 = vmul.f32 %v2522, %v2719
        %v2761 = vmul.f32 %v2524, %v2720
        %v2762 = vmul.f32 %v2526, %v2720
        %v2763 = vmul.f32 %v2528, %v2721
        %v2764 = vmul.f32 %v2530, %v2721
        %v2765 = vmul.f32 %v2532, %v2722
        %v2766 = vmul.f32 %v2534, %v2722
        %v2767 = vmul.f32 %v2536, %v2723
        %v2768 = vmul.f32 %v2538, %v2723
        %v2769 = vmul.f32 %v2540, %v2724
        %v2770 = vmul.f32 %v2542, %v2724
        %v2771 = vmul.f32 %v2544, %v2725
        %v2772 = vmul.f32 %v2546, %v2725
        %v2773 = vmul.f32 %v2548, %v2726
        %v2774 = vmul.f32 %v2550, %v2726
        %v2775 = vmul.f32 %v2552, %v2727
        %v2776 = vmul.f32 %v2554, %v2727
        %v2777 = vmul.f32 %v2556, %v2728
        %v2778 = vmul.f32 %v2558, %v2728
        %v2779 = vmul.f32 %v2560, %v2729
        %v2780 = vmul.f32 %v2562, %v2729
        %v2781 = vmul.f32 %v2564, %v2730
        %v2782 = vmul.f32 %v2566, %v2730
        %v2783 = vmul.f32 %v2568, %v2731
        %v2784 = vmul.f32 %v2570, %v2731
        %v2785 = vmul.f32 %v2572, %v2732
        %v2786 = vmul.f32 %v2574, %v2732
        %v2787 = vmul.f32 %v2576, %v2733
        %v2788 = vmul.f32 %v2578, %v2733
        %v2789 = vmul.f32 %v2580, %v2734
        %v2790 = vmul.f32 %v2582, %v2734
        %v2791 = vmul.f32 %v2584, %v2735
        %v2792 = vmul.f32 %v2586, %v2735
        %v2793 = vmul.f32 %v2588, %v2736
        %v2794 = vmul.f32 %v2590, %v2736
        %v2795 = vmul.f32 %v2592, %v2737
        %v2796 = vmul.f32 %v2594, %v2737
        %v2797 = vmul.f32 %v2596, %v2738
        %v2798 = vmul.f32 %v2598, %v2738
        %v2799 = vmul.f32 %v2600, %v2739
        %v2800 = vmul.f32 %v2602, %v2739
        %v2801 = vmul.f32 %v2604, %v2740
        %v2802 = vmul.f32 %v2606, %v2740
        %v2803 = vmul.f32 %v2608, %v2741
        %v2804 = vmul.f32 %v2610, %v2741
        %v2805 = vmul.f32 %v2612, %v2742
        %v2806 = vmul.f32 %v2614, %v2742
        %v2809 = vrot.slane %v711, 4
        %v2810 = vrot.slane %v713, 4
        %2813 = vmatprep.subr.mxu0 %v2744
        %2814 = vmatpush1.xpose.msra.mxu0 %v2743
        %2815 = vmatprep.subr.mxu0 %v2746
        %2816 = vmatpush1.xpose.msra.mxu0 %v2745
        %2817 = vmatprep.subr.mxu0 %v2748
        %2818 = vmatpush1.xpose.msra.mxu0 %v2747
        %2819 = vmatprep.subr.mxu0 %v2750
        %2820 = vmatpush1.xpose.msra.mxu0 %v2749
        %2821 = vmatprep.subr.mxu0 %v2752
        %2822 = vmatpush1.xpose.msra.mxu0 %v2751
        %2823 = vmatprep.subr.mxu0 %v2754
        %2824 = vmatpush1.xpose.msra.mxu0 %v2753
        %2825 = vmatprep.subr.mxu0 %v2756
        %2826 = vmatpush1.xpose.msra.mxu0 %v2755
        %2827 = vmatprep.subr.mxu0 %v2758
        %2828 = vmatpush1.xpose.msra.mxu0 %v2757
        %2829 = vmatprep.subr.mxu0 %v2760
        %2830 = vmatpush1.xpose.msra.mxu0 %v2759
        %2831 = vmatprep.subr.mxu0 %v2762
        %2832 = vmatpush1.xpose.msra.mxu0 %v2761
        %2833 = vmatprep.subr.mxu0 %v2764
        %2834 = vmatpush1.xpose.msra.mxu0 %v2763
        %2835 = vmatprep.subr.mxu0 %v2766
        %2836 = vmatpush1.xpose.msra.mxu0 %v2765
        %2837 = vmatprep.subr.mxu0 %v2768
        %2838 = vmatpush1.xpose.msra.mxu0 %v2767
        %2839 = vmatprep.subr.mxu0 %v2770
        %2840 = vmatpush1.xpose.msra.mxu0 %v2769
        %2841 = vmatprep.subr.mxu0 %v2772
        %2842 = vmatpush1.xpose.msra.mxu0 %v2771
        %2843 = vmatprep.subr.mxu0 %v2774
        %2844 = vmatpush1.xpose.msra.mxu0 %v2773
        %2845 = vmatprep.subr.mxu0 %v2776
        %2846 = vmatpush1.xpose.msra.mxu0 %v2775
        %2847 = vmatprep.subr.mxu0 %v2778
        %2848 = vmatpush1.xpose.msra.mxu0 %v2777
        %2849 = vmatprep.subr.mxu0 %v2780
        %2850 = vmatpush1.xpose.msra.mxu0 %v2779
        %2851 = vmatprep.subr.mxu0 %v2782
        %2852 = vmatpush1.xpose.msra.mxu0 %v2781
        %2853 = vmatprep.subr.mxu0 %v2784
        %2854 = vmatpush1.xpose.msra.mxu0 %v2783
        %2855 = vmatprep.subr.mxu0 %v2786
        %2856 = vmatpush1.xpose.msra.mxu0 %v2785
        %2857 = vmatprep.subr.mxu0 %v2788
        %2858 = vmatpush1.xpose.msra.mxu0 %v2787
        %2859 = vmatprep.subr.mxu0 %v2790
        %2860 = vmatpush1.xpose.msra.mxu0 %v2789
        %2861 = vmatprep.subr.mxu0 %v2792
        %2862 = vmatpush1.xpose.msra.mxu0 %v2791
        %2863 = vmatprep.subr.mxu0 %v2794
        %2864 = vmatpush1.xpose.msra.mxu0 %v2793
        %2865 = vmatprep.subr.mxu0 %v2796
        %2866 = vmatpush1.xpose.msra.mxu0 %v2795
        %2867 = vmatprep.subr.mxu0 %v2798
        %2868 = vmatpush1.xpose.msra.mxu0 %v2797
        %2869 = vmatprep.subr.mxu0 %v2800
        %2870 = vmatpush1.xpose.msra.mxu0 %v2799
        %2871 = vmatprep.subr.mxu0 %v2802
        %2872 = vmatpush1.xpose.msra.mxu0 %v2801
        %2873 = vmatprep.subr.mxu0 %v2804
        %2874 = vmatpush1.xpose.msra.mxu0 %v2803
        %2875 = vmatprep.subr.mxu0 %v2806
        %2876 = vmatpush1.xpose.msra.mxu0 %v2805
        %2877 = vmatprep.mubr.f32.mxu0 %v2810
        %2878 = vmatmul.mubr.f32.gmra.mrb[0].mxu0 %v2809
        %v2879 = vpop.f32.mrb[0].mxu0
        %v2880 = vadd.f32 0.0, %v2879
        %v2881 = vpop.f32.mrb[0].mxu0
        %v2882 = vadd.f32 0.0, %v2881
        %2883 = vdwg.mxu0
        %v2886 = vrot.slane %v2880, 4
        %v2887 = vrot.slane %v2882, 4
        %2890 = vst [vmem:[%s259] sm:$0xf0] %v2886
        %2891 = vst [vmem:[%s259 + $0x8] sm:$0xf0] %v2887
        %s2892 = sand.u32 %s164, 1
        %s2893 = scalar_lea.sflag [#allocation3], %s2892
        %s2894 = sand.u32 %s164, 1
        %s2895 = smul.addr %s2894, 16
        %s2896 = scalar_lea.vmem [#allocation2], %s2895
        // Predicated region
        $region45: #{tpu_custom_call.1} parent=43 // pred_check
          %p2897 = pneg %p174
        $region46: #{tpu_custom_call.1} parent=43 // pred_check_branch
          %2899 = sbr.rel (%p2897) target = $region48
        $region47: #{tpu_custom_call.1} parent=43 // pred_region
          %s2901 = ssub.s32 256, 256
          %2902 = vsyncadd %s2893, %s2901
          %s2903 = smul.addr %s20, 2
          %s2904 = smul.addr %s2903, 128
          %s2905 = scalar_lea.hbm %s6, %s2904
          %s2907 = sshll.u32 %s2896, 4
          %s2908 = int_to_ptr.vmem [resolvable:$true] %s2907
          %2910 = dma.vmem_to_hbm [thread:$0]  %s2908, 256, %s2905, %s2893
        $region48: #{tpu_custom_call.1} parent=43 // pred_fallthru
          _
      $region44: #{tpu_custom_call.1} parent=5 // pred_fallthru
        _
      %p2911 = scmp.le.s32.totalorder 2, %s15
      // Predicated region
      $region49: #{tpu_custom_call.1} parent=5 // pred_check
        %p2912 = pneg %p2911
      $region50: #{tpu_custom_call.1} parent=5 // pred_check_branch
        %2914 = sbr.rel (%p2912) target = $region52
      $region51: #{tpu_custom_call.1} parent=5 // pred_region
        %s2915 = ssub.s32 %s15, 2
        // Predicated region
        $region53: #{tpu_custom_call.1} parent=51 // pred_check
          %p2916 = pneg %p180
        $region54: #{tpu_custom_call.1} parent=51 // pred_check_branch
          %2918 = sbr.rel (%p2916) target = $region56
        $region55: #{tpu_custom_call.1} parent=51 // pred_region
          %s2919 = sand.u32 %s165, 1
          %s2920 = scalar_lea.sflag [#allocation3], %s2919
          %s2921 = sand.u32 %s165, 1
          %s2922 = smul.addr %s2921, 16
          %s2923 = scalar_lea.vmem [#allocation2], %s2922
          %2924 = dma.done %s2920, 256
        $region56: #{tpu_custom_call.1} parent=51 // pred_fallthru
          _
      $region52: #{tpu_custom_call.1} parent=5 // pred_fallthru
        _
    $region6: #{tpu_custom_call.1} parent=1 // loop_footer
      %s19 = sadd.s32 1, %s15
    $region7: #{tpu_custom_call.1} parent=1 // loop_footer_branch
      %14 = sbr.rel target = $region3
    $region8: #{tpu_custom_call.1} parent=1 // loop_exit
      _
    %2925 = vsyncpa [#allocation3], 1
    %s2926 = scalar_lea.sflag [#allocation3], 1
    %2927 = vsyncpa %s2926, 1

</llo_original>
